<compile_context>
chip_gen: v6e
topology: v6e:2x2x1
jax: 0.10.0
libtpu: 0.0.40
codegen_flags: <defaults>
</compile_context>

<pallas_src>
import jax
import jax.numpy as jnp
from jax.experimental import pallas as pl
from jax.experimental.pallas import tpu as pltpu

DEG = 4                                  # chebyshev_degree in ChebyshevKAN
VMEM_ACT_BUDGET = 20 * 1024 * 1024       # per-step activation working-set target
VMEM_LIMIT = 48 * 1024 * 1024            # scoped-VMEM cap handed to Mosaic (<64 MiB v7x)


def _round_up(v, m):
    return ((v + m - 1) // m) * m


# ---------------------------------------------------------------------------
# Kernel
# ---------------------------------------------------------------------------
def _kan_layer(x, w_ref, bias_ref):
    """One ChebyshevKANLinear as 5 accumulated MXU dots.

    x:        [tile_b, in]        f32 activations
    w_ref:    [DEG+1, in, out]    bf16; slab 0 = base (silu) weight,
                                  slabs 1..4 = T1..T4 scaled Chebyshev weights
    bias_ref: [1, out]            f32 == cw[0].sum(axis=0)  (the T_0 == ones term)
    """
    t = jnp.tanh(x)                       # T_1
    t2 = 2.0 * t * t - 1.0                # T_2 = 2 t T_1 - T_0
    t3 = 2.0 * t * t2 - t                 # T_3
    t4 = 2.0 * t * t3 - t2                # T_4

    acc = bias_ref[...] + jnp.dot(jax.nn.silu(x).astype(jnp.bfloat16), w_ref[0],
                                  preferred_element_type=jnp.float32)
    acc = acc + jnp.dot(t.astype(jnp.bfloat16), w_ref[1],
                        preferred_element_type=jnp.float32)
    acc = acc + jnp.dot(t2.astype(jnp.bfloat16), w_ref[2],
                        preferred_element_type=jnp.float32)
    acc = acc + jnp.dot(t3.astype(jnp.bfloat16), w_ref[3],
                        preferred_element_type=jnp.float32)
    acc = acc + jnp.dot(t4.astype(jnp.bfloat16), w_ref[4],
                        preferred_element_type=jnp.float32)
    return acc


def _layer_norm(h, gamma, beta, eps=1e-5):
    mu = jnp.mean(h, axis=-1, keepdims=True)
    var = jnp.mean((h - mu) ** 2, axis=-1, keepdims=True)
    return (h - mu) * jax.lax.rsqrt(var + eps) * gamma + beta


def chebykan_kernel(x_ref,
                    w1_ref, c1_ref, g1_ref, b1_ref,
                    w2_ref, c2_ref, g2_ref, b2_ref,
                    w3_ref, c3_ref,
                    out_ref):
    x = x_ref[...]
    h = _kan_layer(x, w1_ref, c1_ref)
    h = _layer_norm(h, g1_ref[...], b1_ref[...])
    h = _kan_layer(h, w2_ref, c2_ref)
    h = _layer_norm(h, g2_ref[...], b2_ref[...])
    h = _kan_layer(h, w3_ref, c3_ref)
    out_ref[...] = h.astype(out_ref.dtype)


# ---------------------------------------------------------------------------
# Wrapper
# ---------------------------------------------------------------------------
def _choose_tile_b(B, n_features, out_padded):
    """Batch rows per grid step: bounded by a VMEM activation budget and by a
    minimum grid depth (~8 steps) so the pipeline can overlap DMA with compute
    and v7x megacore can shard the batch axis."""
    # f32 working set per row: double-buffered x tile, ~6 feature-wide
    # intermediates (x, silu, t, t2, t3, t4), small hidden activations,
    # double-buffered padded output tile.
    bytes_per_row = 4 * (2 * n_features + 6 * n_features + 64 + 2 * out_padded)
    tile = max(8, VMEM_ACT_BUDGET // bytes_per_row)
    tile = min(tile, max(8, pl.cdiv(B, 8)))   # aim for >= ~8 grid steps
    tile = min(tile, 1024)
    return int((tile // 8) * 8)               # sublane-aligned


def chebykan_forward(x, params):
    """x: any shape whose element count is a multiple of n_features; returns [B, 10]."""
    n_features = params["w1"].shape[1]
    out_features = params["out_features"]
    out_padded = params["w3"].shape[2]        # lane-dense (multiple of 128) output width

    x2d = x.reshape(-1, n_features).astype(jnp.float32)
    B = x2d.shape[0]

    tile_b = _choose_tile_b(B, n_features, out_padded)
    grid = (pl.cdiv(B, tile_b),)

    def resident_spec(arr):
        nd = arr.ndim
        return pl.BlockSpec(arr.shape, lambda i, _nd=nd: (0,) * _nd)

    args = (x2d,
            params["w1"], params["c1"], params["g1"], params["b1"],
            params["w2"], params["c2"], params["g2"], params["b2"],
            params["w3"], params["c3"])

    in_specs = [pl.BlockSpec((tile_b, n_features), lambda i: (i, 0))]
    in_specs += [resident_spec(a) for a in args[1:]]

    out = pl.pallas_call(
        chebykan_kernel,
        out_shape=jax.ShapeDtypeStruct((B, out_padded), jnp.float32),
        grid=grid,
        in_specs=in_specs,
        out_specs=pl.BlockSpec((tile_b, out_padded), lambda i: (i, 0)),
        compiler_params=pltpu.CompilerParams(
            dimension_semantics=("parallel",),
            vmem_limit_bytes=VMEM_LIMIT),
    )(*args)
    return out[:, :out_features]


# ---------------------------------------------------------------------------
# Parameter construction (mirrors ChebyshevKANLinear.reset_parameters shapes)
# ---------------------------------------------------------------------------
def _init_kan_layer(key, in_f, out_f, deg=DEG, scale_noise=0.1):
    """Returns base weight [in, out] and scaler-multiplied cheb weight [deg+1, in, out]."""
    k1, k2, k3 = jax.random.split(key, 3)
    bound = 1.0 / jnp.sqrt(jnp.float32(in_f))
    base_w = jax.random.uniform(k1, (out_f, in_f), jnp.float32, -bound, bound)
    cheb_w = (jax.random.uniform(k2, (out_f, in_f, deg + 1), jnp.float32) - 0.5) * scale_noise
    scaler = jax.random.uniform(k3, (out_f, in_f), jnp.float32, -bound, bound)
    scaled_cheb = cheb_w * scaler[:, :, None]                 # [out, in, deg+1]
    bw = jnp.transpose(base_w, (1, 0))                        # [in, out]
    cw = jnp.transpose(scaled_cheb, (2, 1, 0))                # [deg+1, in, out]
    return bw, cw


def _pack_layer(bw, cw, pad_out_to=None):
    """Stack base + T1..T4 weights into one bf16 [DEG+1, in, out] tensor; fold the
    T_0 (== ones) contribution into a f32 [1, out] bias (ones @ cw[0] == cw[0].sum(0)).
    Optionally zero-pad the output dim (lane-dense final store)."""
    w = jnp.stack([bw] + [cw[k] for k in range(1, DEG + 1)], axis=0)
    bias = jnp.sum(cw[0], axis=0, keepdims=True)
    if pad_out_to is not None and pad_out_to > w.shape[-1]:
        pad = pad_out_to - w.shape[-1]
        w = jnp.pad(w, ((0, 0), (0, 0), (0, pad)))
        bias = jnp.pad(bias, ((0, 0), (0, pad)))
    return w.astype(jnp.bfloat16), bias.astype(jnp.float32)


def make_params(key, n_features, out_features=10):
    k1, k2, k3 = jax.random.split(key, 3)
    bw1, cw1 = _init_kan_layer(k1, n_features, 32)
    bw2, cw2 = _init_kan_layer(k2, 32, 16)
    bw3, cw3 = _init_kan_layer(k3, 16, out_features)
    out_pad = _round_up(out_features, 128)
    w1, c1 = _pack_layer(bw1, cw1)
    w2, c2 = _pack_layer(bw2, cw2)
    w3, c3 = _pack_layer(bw3, cw3, pad_out_to=out_pad)
    return dict(
        # packed params consumed by the kernel
        w1=w1, c1=c1, w2=w2, c2=c2, w3=w3, c3=c3,
        g1=jnp.ones((1, 32), jnp.float32), b1=jnp.zeros((1, 32), jnp.float32),
        g2=jnp.ones((1, 16), jnp.float32), b2=jnp.zeros((1, 16), jnp.float32),
        out_features=out_features,
        # raw f32 params kept for the pure-JAX references
        bw1=bw1, cw1=cw1, bw2=bw2, cw2=cw2, bw3=bw3, cw3=cw3,
    )


# ---------------------------------------------------------------------------
# Pure-JAX references
# ---------------------------------------------------------------------------
def reference_forward(x, params):
    """Full-f32 reference of the PyTorch forward."""
    n_features = params["bw1"].shape[0]
    h = x.reshape(-1, n_features).astype(jnp.float32)

    def kan(h, bw, cw):
        base = jax.nn.silu(h) @ bw
        t = jnp.tanh(h)
        Ts = [jnp.ones_like(t), t]
        for _ in range(2, DEG + 1):
            Ts.append(2.0 * t * Ts[-1] - Ts[-2])
        return base + sum(Ts[k] @ cw[k] for k in range(DEG + 1))

    def ln(h, g, b, eps=1e-5):
        mu = h.mean(-1, keepdims=True)
        var = ((h - mu) ** 2).mean(-1, keepdims=True)
        return (h - mu) / jnp.sqrt(var + eps) * g + b

    h = kan(h, params["bw1"], params["cw1"])
    h = ln(h, params["g1"], params["b1"])
    h = kan(h, params["bw2"], params["cw2"])
    h = ln(h, params["g2"], params["b2"])
    h = kan(h, params["bw3"], params["cw3"])
    return h


def reference_forward_mixed(x, params):
    """Reference with the kernel's precision choices (bf16 MXU operands, f32 accumulation
    and elementwise math) — validates the Pallas plumbing to tight tolerance."""
    n_features = params["w1"].shape[1]
    h = x.reshape(-1, n_features).astype(jnp.float32)

    def kan(h, w, c):
        t = jnp.tanh(h)
        t2 = 2.0 * t * t - 1.0
        t3 = 2.0 * t * t2 - t
        t4 = 2.0 * t * t3 - t2
        acc = c
        for k, f in enumerate([jax.nn.silu(h), t, t2, t3, t4]):
            acc = acc + jnp.dot(f.astype(jnp.bfloat16), w[k],
                                preferred_element_type=jnp.float32)
        return acc

    def ln(h, g, b, eps=1e-5):
        mu = h.mean(-1, keepdims=True)
        var = ((h - mu) ** 2).mean(-1, keepdims=True)
        return (h - mu) * jax.lax.rsqrt(var + eps) * g + b

    h = kan(h, params["w1"], params["c1"])
    h = ln(h, params["g1"], params["b1"])
    h = kan(h, params["w2"], params["c2"])
    h = ln(h, params["g2"], params["b2"])
    h = kan(h, params["w3"], params["c3"])
    return h[:, :params["out_features"]]


if __name__ == "__main__":
    key = jax.random.PRNGKey(0)
    kx, kp = jax.random.split(key)

    n_features = 64                                         # small stand-in for 28*28
    x = jax.random.normal(kx, (8, 1, 8, 8), jnp.float32)    # flattens to (8, 64)

    params = make_params(kp, n_features)

    out = chebykan_forward(x, params)
    out = jax.block_until_ready(out)
    assert out.shape == (8, 10)

    ref_mixed = reference_forward_mixed(x, params)   # same bf16-operand math as the kernel
    ref_f32 = reference_forward(x, params)           # full-f32 PyTorch-equivalent math
    assert jnp.allclose(out, ref_mixed, atol=1e-2, rtol=1e-2), \
        float(jnp.max(jnp.abs(out - ref_mixed)))
    assert jnp.allclose(out, ref_f32, atol=1e-1, rtol=1e-1), \
        float(jnp.max(jnp.abs(out - ref_f32)))

    print("KERNEL_OK")
</pallas_src>

<mosaic_0001>
module attributes {stable_mosaic.version = 11 : i64} {
  func.func @chebykan_kernel(%arg0: i32, %arg1: memref<8x64xf32, #tpu.memory_space<vmem>>, %arg2: memref<5x64x32xbf16, #tpu.memory_space<vmem>>, %arg3: memref<1x32xf32, #tpu.memory_space<vmem>>, %arg4: memref<1x32xf32, #tpu.memory_space<vmem>>, %arg5: memref<1x32xf32, #tpu.memory_space<vmem>>, %arg6: memref<5x32x16xbf16, #tpu.memory_space<vmem>>, %arg7: memref<1x16xf32, #tpu.memory_space<vmem>>, %arg8: memref<1x16xf32, #tpu.memory_space<vmem>>, %arg9: memref<1x16xf32, #tpu.memory_space<vmem>>, %arg10: memref<5x16x128xbf16, #tpu.memory_space<vmem>>, %arg11: memref<1x128xf32, #tpu.memory_space<vmem>>, %arg12: memref<8x128xf32, #tpu.memory_space<vmem>>) attributes {dimension_semantics = [#tpu.dimension_semantics<parallel>], iteration_bounds = array<i64: 1>, scalar_prefetch = 0 : i64, scratch_operands = 0 : i64, tpu.core_type = #tpu.core_type<tc>, window_params = [{transform_indices = @transform_0, window_bounds = array<i64: 8, 64>}, {pipeline_mode = #tpu.pipeline_mode<synchronous>, transform_indices = @transform_1, window_bounds = array<i64: 5, 64, 32>}, {pipeline_mode = #tpu.pipeline_mode<synchronous>, transform_indices = @transform_2, window_bounds = array<i64: 1, 32>}, {pipeline_mode = #tpu.pipeline_mode<synchronous>, transform_indices = @transform_3, window_bounds = array<i64: 1, 32>}, {pipeline_mode = #tpu.pipeline_mode<synchronous>, transform_indices = @transform_4, window_bounds = array<i64: 1, 32>}, {pipeline_mode = #tpu.pipeline_mode<synchronous>, transform_indices = @transform_5, window_bounds = array<i64: 5, 32, 16>}, {pipeline_mode = #tpu.pipeline_mode<synchronous>, transform_indices = @transform_6, window_bounds = array<i64: 1, 16>}, {pipeline_mode = #tpu.pipeline_mode<synchronous>, transform_indices = @transform_7, window_bounds = array<i64: 1, 16>}, {pipeline_mode = #tpu.pipeline_mode<synchronous>, transform_indices = @transform_8, window_bounds = array<i64: 1, 16>}, {pipeline_mode = #tpu.pipeline_mode<synchronous>, transform_indices = @transform_9, window_bounds = array<i64: 5, 16, 128>}, {pipeline_mode = #tpu.pipeline_mode<synchronous>, transform_indices = @transform_10, window_bounds = array<i64: 1, 128>}, {transform_indices = @transform_11, window_bounds = array<i64: 8, 128>}]} {
    %c0 = arith.constant 0 : index
    %c0_0 = arith.constant 0 : index
    %0 = vector.load %arg1[%c0, %c0_0] : memref<8x64xf32, #tpu.memory_space<vmem>>, vector<8x64xf32>
    %1 = math.tanh %0 : vector<8x64xf32>
    %cst = arith.constant 2.000000e+00 : f32
    %2 = vector.broadcast %cst : f32 to vector<8x64xf32>
    %3 = arith.mulf %2, %1 : vector<8x64xf32>
    %4 = arith.mulf %3, %1 : vector<8x64xf32>
    %cst_1 = arith.constant 1.000000e+00 : f32
    %5 = vector.broadcast %cst_1 : f32 to vector<8x64xf32>
    %6 = arith.subf %4, %5 : vector<8x64xf32>
    %cst_2 = arith.constant 2.000000e+00 : f32
    %7 = vector.broadcast %cst_2 : f32 to vector<8x64xf32>
    %8 = arith.mulf %7, %1 : vector<8x64xf32>
    %9 = arith.mulf %8, %6 : vector<8x64xf32>
    %10 = arith.subf %9, %1 : vector<8x64xf32>
    %cst_3 = arith.constant 2.000000e+00 : f32
    %11 = vector.broadcast %cst_3 : f32 to vector<8x64xf32>
    %12 = arith.mulf %11, %1 : vector<8x64xf32>
    %13 = arith.mulf %12, %10 : vector<8x64xf32>
    %14 = arith.subf %13, %6 : vector<8x64xf32>
    %c0_4 = arith.constant 0 : index
    %c0_5 = arith.constant 0 : index
    %15 = vector.load %arg3[%c0_4, %c0_5] : memref<1x32xf32, #tpu.memory_space<vmem>>, vector<1x32xf32>
    %16 = arith.negf %0 : vector<8x64xf32>
    %17 = math.exp %16 : vector<8x64xf32>
    %cst_6 = arith.constant 1.000000e+00 : f32
    %18 = vector.broadcast %cst_6 : f32 to vector<8x64xf32>
    %19 = arith.addf %18, %17 : vector<8x64xf32>
    %20 = arith.divf %18, %19 : vector<8x64xf32>
    %21 = arith.mulf %0, %20 : vector<8x64xf32>
    %22 = arith.truncf %21 : vector<8x64xf32> to vector<8x64xbf16>
    %c0_7 = arith.constant 0 : index
    %c0_8 = arith.constant 0 : index
    %c0_9 = arith.constant 0 : index
    %23 = vector.load %arg2[%c0_7, %c0_8, %c0_9] : memref<5x64x32xbf16, #tpu.memory_space<vmem>>, vector<1x64x32xbf16>
    %24 = vector.shape_cast %23 : vector<1x64x32xbf16> to vector<64x32xbf16>
    %cst_10 = arith.constant dense<0.000000e+00> : vector<8x32xf32>
    %25 = tpu.matmul %22, %24, %cst_10 {dimension_numbers = #tpu.dot_dimension_numbers<[1], [0], [0], [1], [0, 0, 1, 1], [], []>} : vector<8x64xbf16>, vector<64x32xbf16>, vector<8x32xf32> -> vector<8x32xf32>
    %26 = vector.broadcast %15 : vector<1x32xf32> to vector<8x32xf32>
    %27 = arith.addf %26, %25 : vector<8x32xf32>
    %28 = arith.truncf %1 : vector<8x64xf32> to vector<8x64xbf16>
    %c1 = arith.constant 1 : index
    %c0_11 = arith.constant 0 : index
    %c0_12 = arith.constant 0 : index
    %29 = vector.load %arg2[%c1, %c0_11, %c0_12] : memref<5x64x32xbf16, #tpu.memory_space<vmem>>, vector<1x64x32xbf16>
    %30 = vector.shape_cast %29 : vector<1x64x32xbf16> to vector<64x32xbf16>
    %cst_13 = arith.constant dense<0.000000e+00> : vector<8x32xf32>
    %31 = tpu.matmul %28, %30, %cst_13 {dimension_numbers = #tpu.dot_dimension_numbers<[1], [0], [0], [1], [0, 0, 1, 1], [], []>} : vector<8x64xbf16>, vector<64x32xbf16>, vector<8x32xf32> -> vector<8x32xf32>
    %32 = arith.addf %27, %31 : vector<8x32xf32>
    %33 = arith.truncf %6 : vector<8x64xf32> to vector<8x64xbf16>
    %c2 = arith.constant 2 : index
    %c0_14 = arith.constant 0 : index
    %c0_15 = arith.constant 0 : index
    %34 = vector.load %arg2[%c2, %c0_14, %c0_15] : memref<5x64x32xbf16, #tpu.memory_space<vmem>>, vector<1x64x32xbf16>
    %35 = vector.shape_cast %34 : vector<1x64x32xbf16> to vector<64x32xbf16>
    %cst_16 = arith.constant dense<0.000000e+00> : vector<8x32xf32>
    %36 = tpu.matmul %33, %35, %cst_16 {dimension_numbers = #tpu.dot_dimension_numbers<[1], [0], [0], [1], [0, 0, 1, 1], [], []>} : vector<8x64xbf16>, vector<64x32xbf16>, vector<8x32xf32> -> vector<8x32xf32>
    %37 = arith.addf %32, %36 : vector<8x32xf32>
    %38 = arith.truncf %10 : vector<8x64xf32> to vector<8x64xbf16>
    %c3 = arith.constant 3 : index
    %c0_17 = arith.constant 0 : index
    %c0_18 = arith.constant 0 : index
    %39 = vector.load %arg2[%c3, %c0_17, %c0_18] : memref<5x64x32xbf16, #tpu.memory_space<vmem>>, vector<1x64x32xbf16>
    %40 = vector.shape_cast %39 : vector<1x64x32xbf16> to vector<64x32xbf16>
    %cst_19 = arith.constant dense<0.000000e+00> : vector<8x32xf32>
    %41 = tpu.matmul %38, %40, %cst_19 {dimension_numbers = #tpu.dot_dimension_numbers<[1], [0], [0], [1], [0, 0, 1, 1], [], []>} : vector<8x64xbf16>, vector<64x32xbf16>, vector<8x32xf32> -> vector<8x32xf32>
    %42 = arith.addf %37, %41 : vector<8x32xf32>
    %43 = arith.truncf %14 : vector<8x64xf32> to vector<8x64xbf16>
    %c4 = arith.constant 4 : index
    %c0_20 = arith.constant 0 : index
    %c0_21 = arith.constant 0 : index
    %44 = vector.load %arg2[%c4, %c0_20, %c0_21] : memref<5x64x32xbf16, #tpu.memory_space<vmem>>, vector<1x64x32xbf16>
    %45 = vector.shape_cast %44 : vector<1x64x32xbf16> to vector<64x32xbf16>
    %cst_22 = arith.constant dense<0.000000e+00> : vector<8x32xf32>
    %46 = tpu.matmul %43, %45, %cst_22 {dimension_numbers = #tpu.dot_dimension_numbers<[1], [0], [0], [1], [0, 0, 1, 1], [], []>} : vector<8x64xbf16>, vector<64x32xbf16>, vector<8x32xf32> -> vector<8x32xf32>
    %47 = arith.addf %42, %46 : vector<8x32xf32>
    %c0_23 = arith.constant 0 : index
    %c0_24 = arith.constant 0 : index
    %48 = vector.load %arg4[%c0_23, %c0_24] : memref<1x32xf32, #tpu.memory_space<vmem>>, vector<1x32xf32>
    %c0_25 = arith.constant 0 : index
    %c0_26 = arith.constant 0 : index
    %49 = vector.load %arg5[%c0_25, %c0_26] : memref<1x32xf32, #tpu.memory_space<vmem>>, vector<1x32xf32>
    %cst_27 = arith.constant dense<0.000000e+00> : vector<8xf32>
    %50 = vector.multi_reduction <add>, %47, %cst_27 [1] : vector<8x32xf32> to vector<8xf32>
    %51 = vector.shape_cast %50 : vector<8xf32> to vector<8x1xf32>
    %cst_28 = arith.constant 3.200000e+01 : f32
    %52 = vector.broadcast %cst_28 : f32 to vector<8x1xf32>
    %53 = arith.divf %51, %52 : vector<8x1xf32>
    %54 = vector.broadcast %53 : vector<8x1xf32> to vector<8x32xf32>
    %55 = arith.subf %47, %54 : vector<8x32xf32>
    %56 = arith.mulf %55, %55 : vector<8x32xf32>
    %cst_29 = arith.constant dense<0.000000e+00> : vector<8xf32>
    %57 = vector.multi_reduction <add>, %56, %cst_29 [1] : vector<8x32xf32> to vector<8xf32>
    %58 = vector.shape_cast %57 : vector<8xf32> to vector<8x1xf32>
    %cst_30 = arith.constant 3.200000e+01 : f32
    %59 = vector.broadcast %cst_30 : f32 to vector<8x1xf32>
    %60 = arith.divf %58, %59 : vector<8x1xf32>
    %61 = vector.broadcast %53 : vector<8x1xf32> to vector<8x32xf32>
    %62 = arith.subf %47, %61 : vector<8x32xf32>
    %cst_31 = arith.constant 9.99999974E-6 : f32
    %63 = vector.broadcast %cst_31 : f32 to vector<8x1xf32>
    %64 = arith.addf %60, %63 : vector<8x1xf32>
    %65 = math.rsqrt %64 : vector<8x1xf32>
    %66 = vector.broadcast %65 : vector<8x1xf32> to vector<8x32xf32>
    %67 = arith.mulf %62, %66 : vector<8x32xf32>
    %68 = vector.broadcast %48 : vector<1x32xf32> to vector<8x32xf32>
    %69 = arith.mulf %67, %68 : vector<8x32xf32>
    %70 = vector.broadcast %49 : vector<1x32xf32> to vector<8x32xf32>
    %71 = arith.addf %69, %70 : vector<8x32xf32>
    %72 = math.tanh %71 : vector<8x32xf32>
    %cst_32 = arith.constant 2.000000e+00 : f32
    %73 = vector.broadcast %cst_32 : f32 to vector<8x32xf32>
    %74 = arith.mulf %73, %72 : vector<8x32xf32>
    %75 = arith.mulf %74, %72 : vector<8x32xf32>
    %cst_33 = arith.constant 1.000000e+00 : f32
    %76 = vector.broadcast %cst_33 : f32 to vector<8x32xf32>
    %77 = arith.subf %75, %76 : vector<8x32xf32>
    %cst_34 = arith.constant 2.000000e+00 : f32
    %78 = vector.broadcast %cst_34 : f32 to vector<8x32xf32>
    %79 = arith.mulf %78, %72 : vector<8x32xf32>
    %80 = arith.mulf %79, %77 : vector<8x32xf32>
    %81 = arith.subf %80, %72 : vector<8x32xf32>
    %cst_35 = arith.constant 2.000000e+00 : f32
    %82 = vector.broadcast %cst_35 : f32 to vector<8x32xf32>
    %83 = arith.mulf %82, %72 : vector<8x32xf32>
    %84 = arith.mulf %83, %81 : vector<8x32xf32>
    %85 = arith.subf %84, %77 : vector<8x32xf32>
    %c0_36 = arith.constant 0 : index
    %c0_37 = arith.constant 0 : index
    %86 = vector.load %arg7[%c0_36, %c0_37] : memref<1x16xf32, #tpu.memory_space<vmem>>, vector<1x16xf32>
    %87 = arith.negf %71 : vector<8x32xf32>
    %88 = math.exp %87 : vector<8x32xf32>
    %cst_38 = arith.constant 1.000000e+00 : f32
    %89 = vector.broadcast %cst_38 : f32 to vector<8x32xf32>
    %90 = arith.addf %89, %88 : vector<8x32xf32>
    %91 = arith.divf %89, %90 : vector<8x32xf32>
    %92 = arith.mulf %71, %91 : vector<8x32xf32>
    %93 = arith.truncf %92 : vector<8x32xf32> to vector<8x32xbf16>
    %c0_39 = arith.constant 0 : index
    %c0_40 = arith.constant 0 : index
    %c0_41 = arith.constant 0 : index
    %94 = vector.load %arg6[%c0_39, %c0_40, %c0_41] : memref<5x32x16xbf16, #tpu.memory_space<vmem>>, vector<1x32x16xbf16>
    %95 = vector.shape_cast %94 : vector<1x32x16xbf16> to vector<32x16xbf16>
    %cst_42 = arith.constant dense<0.000000e+00> : vector<8x16xf32>
    %96 = tpu.matmul %93, %95, %cst_42 {dimension_numbers = #tpu.dot_dimension_numbers<[1], [0], [0], [1], [0, 0, 1, 1], [], []>} : vector<8x32xbf16>, vector<32x16xbf16>, vector<8x16xf32> -> vector<8x16xf32>
    %97 = vector.broadcast %86 : vector<1x16xf32> to vector<8x16xf32>
    %98 = arith.addf %97, %96 : vector<8x16xf32>
    %99 = arith.truncf %72 : vector<8x32xf32> to vector<8x32xbf16>
    %c1_43 = arith.constant 1 : index
    %c0_44 = arith.constant 0 : index
    %c0_45 = arith.constant 0 : index
    %100 = vector.load %arg6[%c1_43, %c0_44, %c0_45] : memref<5x32x16xbf16, #tpu.memory_space<vmem>>, vector<1x32x16xbf16>
    %101 = vector.shape_cast %100 : vector<1x32x16xbf16> to vector<32x16xbf16>
    %cst_46 = arith.constant dense<0.000000e+00> : vector<8x16xf32>
    %102 = tpu.matmul %99, %101, %cst_46 {dimension_numbers = #tpu.dot_dimension_numbers<[1], [0], [0], [1], [0, 0, 1, 1], [], []>} : vector<8x32xbf16>, vector<32x16xbf16>, vector<8x16xf32> -> vector<8x16xf32>
    %103 = arith.addf %98, %102 : vector<8x16xf32>
    %104 = arith.truncf %77 : vector<8x32xf32> to vector<8x32xbf16>
    %c2_47 = arith.constant 2 : index
    %c0_48 = arith.constant 0 : index
    %c0_49 = arith.constant 0 : index
    %105 = vector.load %arg6[%c2_47, %c0_48, %c0_49] : memref<5x32x16xbf16, #tpu.memory_space<vmem>>, vector<1x32x16xbf16>
    %106 = vector.shape_cast %105 : vector<1x32x16xbf16> to vector<32x16xbf16>
    %cst_50 = arith.constant dense<0.000000e+00> : vector<8x16xf32>
    %107 = tpu.matmul %104, %106, %cst_50 {dimension_numbers = #tpu.dot_dimension_numbers<[1], [0], [0], [1], [0, 0, 1, 1], [], []>} : vector<8x32xbf16>, vector<32x16xbf16>, vector<8x16xf32> -> vector<8x16xf32>
    %108 = arith.addf %103, %107 : vector<8x16xf32>
    %109 = arith.truncf %81 : vector<8x32xf32> to vector<8x32xbf16>
    %c3_51 = arith.constant 3 : index
    %c0_52 = arith.constant 0 : index
    %c0_53 = arith.constant 0 : index
    %110 = vector.load %arg6[%c3_51, %c0_52, %c0_53] : memref<5x32x16xbf16, #tpu.memory_space<vmem>>, vector<1x32x16xbf16>
    %111 = vector.shape_cast %110 : vector<1x32x16xbf16> to vector<32x16xbf16>
    %cst_54 = arith.constant dense<0.000000e+00> : vector<8x16xf32>
    %112 = tpu.matmul %109, %111, %cst_54 {dimension_numbers = #tpu.dot_dimension_numbers<[1], [0], [0], [1], [0, 0, 1, 1], [], []>} : vector<8x32xbf16>, vector<32x16xbf16>, vector<8x16xf32> -> vector<8x16xf32>
    %113 = arith.addf %108, %112 : vector<8x16xf32>
    %114 = arith.truncf %85 : vector<8x32xf32> to vector<8x32xbf16>
    %c4_55 = arith.constant 4 : index
    %c0_56 = arith.constant 0 : index
    %c0_57 = arith.constant 0 : index
    %115 = vector.load %arg6[%c4_55, %c0_56, %c0_57] : memref<5x32x16xbf16, #tpu.memory_space<vmem>>, vector<1x32x16xbf16>
    %116 = vector.shape_cast %115 : vector<1x32x16xbf16> to vector<32x16xbf16>
    %cst_58 = arith.constant dense<0.000000e+00> : vector<8x16xf32>
    %117 = tpu.matmul %114, %116, %cst_58 {dimension_numbers = #tpu.dot_dimension_numbers<[1], [0], [0], [1], [0, 0, 1, 1], [], []>} : vector<8x32xbf16>, vector<32x16xbf16>, vector<8x16xf32> -> vector<8x16xf32>
    %118 = arith.addf %113, %117 : vector<8x16xf32>
    %c0_59 = arith.constant 0 : index
    %c0_60 = arith.constant 0 : index
    %119 = vector.load %arg8[%c0_59, %c0_60] : memref<1x16xf32, #tpu.memory_space<vmem>>, vector<1x16xf32>
    %c0_61 = arith.constant 0 : index
    %c0_62 = arith.constant 0 : index
    %120 = vector.load %arg9[%c0_61, %c0_62] : memref<1x16xf32, #tpu.memory_space<vmem>>, vector<1x16xf32>
    %cst_63 = arith.constant dense<0.000000e+00> : vector<8xf32>
    %121 = vector.multi_reduction <add>, %118, %cst_63 [1] : vector<8x16xf32> to vector<8xf32>
    %122 = vector.shape_cast %121 : vector<8xf32> to vector<8x1xf32>
    %cst_64 = arith.constant 1.600000e+01 : f32
    %123 = vector.broadcast %cst_64 : f32 to vector<8x1xf32>
    %124 = arith.divf %122, %123 : vector<8x1xf32>
    %125 = vector.broadcast %124 : vector<8x1xf32> to vector<8x16xf32>
    %126 = arith.subf %118, %125 : vector<8x16xf32>
    %127 = arith.mulf %126, %126 : vector<8x16xf32>
    %cst_65 = arith.constant dense<0.000000e+00> : vector<8xf32>
    %128 = vector.multi_reduction <add>, %127, %cst_65 [1] : vector<8x16xf32> to vector<8xf32>
    %129 = vector.shape_cast %128 : vector<8xf32> to vector<8x1xf32>
    %cst_66 = arith.constant 1.600000e+01 : f32
    %130 = vector.broadcast %cst_66 : f32 to vector<8x1xf32>
    %131 = arith.divf %129, %130 : vector<8x1xf32>
    %132 = vector.broadcast %124 : vector<8x1xf32> to vector<8x16xf32>
    %133 = arith.subf %118, %132 : vector<8x16xf32>
    %cst_67 = arith.constant 9.99999974E-6 : f32
    %134 = vector.broadcast %cst_67 : f32 to vector<8x1xf32>
    %135 = arith.addf %131, %134 : vector<8x1xf32>
    %136 = math.rsqrt %135 : vector<8x1xf32>
    %137 = vector.broadcast %136 : vector<8x1xf32> to vector<8x16xf32>
    %138 = arith.mulf %133, %137 : vector<8x16xf32>
    %139 = vector.broadcast %119 : vector<1x16xf32> to vector<8x16xf32>
    %140 = arith.mulf %138, %139 : vector<8x16xf32>
    %141 = vector.broadcast %120 : vector<1x16xf32> to vector<8x16xf32>
    %142 = arith.addf %140, %141 : vector<8x16xf32>
    %143 = math.tanh %142 : vector<8x16xf32>
    %cst_68 = arith.constant 2.000000e+00 : f32
    %144 = vector.broadcast %cst_68 : f32 to vector<8x16xf32>
    %145 = arith.mulf %144, %143 : vector<8x16xf32>
    %146 = arith.mulf %145, %143 : vector<8x16xf32>
    %cst_69 = arith.constant 1.000000e+00 : f32
    %147 = vector.broadcast %cst_69 : f32 to vector<8x16xf32>
    %148 = arith.subf %146, %147 : vector<8x16xf32>
    %cst_70 = arith.constant 2.000000e+00 : f32
    %149 = vector.broadcast %cst_70 : f32 to vector<8x16xf32>
    %150 = arith.mulf %149, %143 : vector<8x16xf32>
    %151 = arith.mulf %150, %148 : vector<8x16xf32>
    %152 = arith.subf %151, %143 : vector<8x16xf32>
    %cst_71 = arith.constant 2.000000e+00 : f32
    %153 = vector.broadcast %cst_71 : f32 to vector<8x16xf32>
    %154 = arith.mulf %153, %143 : vector<8x16xf32>
    %155 = arith.mulf %154, %152 : vector<8x16xf32>
    %156 = arith.subf %155, %148 : vector<8x16xf32>
    %c0_72 = arith.constant 0 : index
    %c0_73 = arith.constant 0 : index
    %157 = vector.load %arg11[%c0_72, %c0_73] : memref<1x128xf32, #tpu.memory_space<vmem>>, vector<1x128xf32>
    %158 = arith.negf %142 : vector<8x16xf32>
    %159 = math.exp %158 : vector<8x16xf32>
    %cst_74 = arith.constant 1.000000e+00 : f32
    %160 = vector.broadcast %cst_74 : f32 to vector<8x16xf32>
    %161 = arith.addf %160, %159 : vector<8x16xf32>
    %162 = arith.divf %160, %161 : vector<8x16xf32>
    %163 = arith.mulf %142, %162 : vector<8x16xf32>
    %164 = arith.truncf %163 : vector<8x16xf32> to vector<8x16xbf16>
    %c0_75 = arith.constant 0 : index
    %c0_76 = arith.constant 0 : index
    %c0_77 = arith.constant 0 : index
    %165 = vector.load %arg10[%c0_75, %c0_76, %c0_77] : memref<5x16x128xbf16, #tpu.memory_space<vmem>>, vector<1x16x128xbf16>
    %166 = vector.shape_cast %165 : vector<1x16x128xbf16> to vector<16x128xbf16>
    %cst_78 = arith.constant dense<0.000000e+00> : vector<8x128xf32>
    %167 = tpu.matmul %164, %166, %cst_78 {dimension_numbers = #tpu.dot_dimension_numbers<[1], [0], [0], [1], [0, 0, 1, 1], [], []>} : vector<8x16xbf16>, vector<16x128xbf16>, vector<8x128xf32> -> vector<8x128xf32>
    %168 = vector.broadcast %157 : vector<1x128xf32> to vector<8x128xf32>
    %169 = arith.addf %168, %167 : vector<8x128xf32>
    %170 = arith.truncf %143 : vector<8x16xf32> to vector<8x16xbf16>
    %c1_79 = arith.constant 1 : index
    %c0_80 = arith.constant 0 : index
    %c0_81 = arith.constant 0 : index
    %171 = vector.load %arg10[%c1_79, %c0_80, %c0_81] : memref<5x16x128xbf16, #tpu.memory_space<vmem>>, vector<1x16x128xbf16>
    %172 = vector.shape_cast %171 : vector<1x16x128xbf16> to vector<16x128xbf16>
    %cst_82 = arith.constant dense<0.000000e+00> : vector<8x128xf32>
    %173 = tpu.matmul %170, %172, %cst_82 {dimension_numbers = #tpu.dot_dimension_numbers<[1], [0], [0], [1], [0, 0, 1, 1], [], []>} : vector<8x16xbf16>, vector<16x128xbf16>, vector<8x128xf32> -> vector<8x128xf32>
    %174 = arith.addf %169, %173 : vector<8x128xf32>
    %175 = arith.truncf %148 : vector<8x16xf32> to vector<8x16xbf16>
    %c2_83 = arith.constant 2 : index
    %c0_84 = arith.constant 0 : index
    %c0_85 = arith.constant 0 : index
    %176 = vector.load %arg10[%c2_83, %c0_84, %c0_85] : memref<5x16x128xbf16, #tpu.memory_space<vmem>>, vector<1x16x128xbf16>
    %177 = vector.shape_cast %176 : vector<1x16x128xbf16> to vector<16x128xbf16>
    %cst_86 = arith.constant dense<0.000000e+00> : vector<8x128xf32>
    %178 = tpu.matmul %175, %177, %cst_86 {dimension_numbers = #tpu.dot_dimension_numbers<[1], [0], [0], [1], [0, 0, 1, 1], [], []>} : vector<8x16xbf16>, vector<16x128xbf16>, vector<8x128xf32> -> vector<8x128xf32>
    %179 = arith.addf %174, %178 : vector<8x128xf32>
    %180 = arith.truncf %152 : vector<8x16xf32> to vector<8x16xbf16>
    %c3_87 = arith.constant 3 : index
    %c0_88 = arith.constant 0 : index
    %c0_89 = arith.constant 0 : index
    %181 = vector.load %arg10[%c3_87, %c0_88, %c0_89] : memref<5x16x128xbf16, #tpu.memory_space<vmem>>, vector<1x16x128xbf16>
    %182 = vector.shape_cast %181 : vector<1x16x128xbf16> to vector<16x128xbf16>
    %cst_90 = arith.constant dense<0.000000e+00> : vector<8x128xf32>
    %183 = tpu.matmul %180, %182, %cst_90 {dimension_numbers = #tpu.dot_dimension_numbers<[1], [0], [0], [1], [0, 0, 1, 1], [], []>} : vector<8x16xbf16>, vector<16x128xbf16>, vector<8x128xf32> -> vector<8x128xf32>
    %184 = arith.addf %179, %183 : vector<8x128xf32>
    %185 = arith.truncf %156 : vector<8x16xf32> to vector<8x16xbf16>
    %c4_91 = arith.constant 4 : index
    %c0_92 = arith.constant 0 : index
    %c0_93 = arith.constant 0 : index
    %186 = vector.load %arg10[%c4_91, %c0_92, %c0_93] : memref<5x16x128xbf16, #tpu.memory_space<vmem>>, vector<1x16x128xbf16>
    %187 = vector.shape_cast %186 : vector<1x16x128xbf16> to vector<16x128xbf16>
    %cst_94 = arith.constant dense<0.000000e+00> : vector<8x128xf32>
    %188 = tpu.matmul %185, %187, %cst_94 {dimension_numbers = #tpu.dot_dimension_numbers<[1], [0], [0], [1], [0, 0, 1, 1], [], []>} : vector<8x16xbf16>, vector<16x128xbf16>, vector<8x128xf32> -> vector<8x128xf32>
    %189 = arith.addf %184, %188 : vector<8x128xf32>
    %c0_95 = arith.constant 0 : index
    %c0_96 = arith.constant 0 : index
    %190 = vector.load %arg12[%c0_95, %c0_96] : memref<8x128xf32, #tpu.memory_space<vmem>>, vector<8x128xf32>
    tpu.vector_store %arg12[%c0_95, %c0_96], %189 {strides = array<i32>} : memref<8x128xf32, #tpu.memory_space<vmem>>, vector<8x128xf32>,
    return
  }
  func.func @transform_0(%arg0: i32) -> (i32, i32) {
    %c0_i32 = arith.constant 0 : i32
    %c0_i32_0 = arith.constant 0 : i32
    return %arg0, %c0_i32 : i32, i32
  }
  func.func @transform_1(%arg0: i32) -> (i32, i32, i32) {
    %c0_i32 = arith.constant 0 : i32
    %c0_i32_0 = arith.constant 0 : i32
    %c0_i32_1 = arith.constant 0 : i32
    %c0_i32_2 = arith.constant 0 : i32
    return %c0_i32, %c0_i32_0, %c0_i32_1 : i32, i32, i32
  }
  func.func @transform_2(%arg0: i32) -> (i32, i32) {
    %c0_i32 = arith.constant 0 : i32
    %c0_i32_0 = arith.constant 0 : i32
    %c0_i32_1 = arith.constant 0 : i32
    return %c0_i32, %c0_i32_0 : i32, i32
  }
  func.func @transform_3(%arg0: i32) -> (i32, i32) {
    %c0_i32 = arith.constant 0 : i32
    %c0_i32_0 = arith.constant 0 : i32
    %c0_i32_1 = arith.constant 0 : i32
    return %c0_i32, %c0_i32_0 : i32, i32
  }
  func.func @transform_4(%arg0: i32) -> (i32, i32) {
    %c0_i32 = arith.constant 0 : i32
    %c0_i32_0 = arith.constant 0 : i32
    %c0_i32_1 = arith.constant 0 : i32
    return %c0_i32, %c0_i32_0 : i32, i32
  }
  func.func @transform_5(%arg0: i32) -> (i32, i32, i32) {
    %c0_i32 = arith.constant 0 : i32
    %c0_i32_0 = arith.constant 0 : i32
    %c0_i32_1 = arith.constant 0 : i32
    %c0_i32_2 = arith.constant 0 : i32
    return %c0_i32, %c0_i32_0, %c0_i32_1 : i32, i32, i32
  }
  func.func @transform_6(%arg0: i32) -> (i32, i32) {
    %c0_i32 = arith.constant 0 : i32
    %c0_i32_0 = arith.constant 0 : i32
    %c0_i32_1 = arith.constant 0 : i32
    return %c0_i32, %c0_i32_0 : i32, i32
  }
  func.func @transform_7(%arg0: i32) -> (i32, i32) {
    %c0_i32 = arith.constant 0 : i32
    %c0_i32_0 = arith.constant 0 : i32
    %c0_i32_1 = arith.constant 0 : i32
    return %c0_i32, %c0_i32_0 : i32, i32
  }
  func.func @transform_8(%arg0: i32) -> (i32, i32) {
    %c0_i32 = arith.constant 0 : i32
    %c0_i32_0 = arith.constant 0 : i32
    %c0_i32_1 = arith.constant 0 : i32
    return %c0_i32, %c0_i32_0 : i32, i32
  }
  func.func @transform_9(%arg0: i32) -> (i32, i32, i32) {
    %c0_i32 = arith.constant 0 : i32
    %c0_i32_0 = arith.constant 0 : i32
    %c0_i32_1 = arith.constant 0 : i32
    %c0_i32_2 = arith.constant 0 : i32
    return %c0_i32, %c0_i32_0, %c0_i32_1 : i32, i32, i32
  }
  func.func @transform_10(%arg0: i32) -> (i32, i32) {
    %c0_i32 = arith.constant 0 : i32
    %c0_i32_0 = arith.constant 0 : i32
    %c0_i32_1 = arith.constant 0 : i32
    return %c0_i32, %c0_i32_0 : i32, i32
  }
  func.func @transform_11(%arg0: i32) -> (i32, i32) {
    %c0_i32 = arith.constant 0 : i32
    %c0_i32_0 = arith.constant 0 : i32
    return %arg0, %c0_i32 : i32, i32
  }
}

</mosaic_0001>

<llo_original>
// kernel: tpu_custom_call.1
$region0: #{tpu_custom_call.1}
  #allocation0 [shape = 'u32[]', space=smem, size = 0x4, offset = 0x4, fixed_abs, tag = 'smem constant byte address 0x4 - core index']
  #allocation1 [shape = 'u32[144,128]{1,0:T(1,128)}', space=vmem, size = 0x12000, scoped, tag = 'internal scratch']
  %s0 = inlined_call_operand.vmem [shape: f32[8,64], index: 0, kind: input, shape index: {}]
  %s1 = inlined_call_operand.vmem [shape: bf16[5,64,32], index: 1, kind: input, shape index: {}]
  %s2 = inlined_call_operand.vmem [shape: f32[1,32], index: 2, kind: input, shape index: {}]
  %s3 = inlined_call_operand.vmem [shape: f32[1,32], index: 3, kind: input, shape index: {}]
  %s4 = inlined_call_operand.vmem [shape: f32[1,32], index: 4, kind: input, shape index: {}]
  %s5 = inlined_call_operand.vmem [shape: bf16[5,32,16], index: 5, kind: input, shape index: {}]
  %s6 = inlined_call_operand.vmem [shape: f32[1,16], index: 6, kind: input, shape index: {}]
  %s7 = inlined_call_operand.vmem [shape: f32[1,16], index: 7, kind: input, shape index: {}]
  %s8 = inlined_call_operand.vmem [shape: f32[1,16], index: 8, kind: input, shape index: {}]
  %s9 = inlined_call_operand.vmem [shape: bf16[5,16,128], index: 9, kind: input, shape index: {}]
  %s10 = inlined_call_operand.vmem [shape: f32[1,128], index: 10, kind: input, shape index: {}]
  %s11 = inlined_call_operand.hbm [shape: f32[8,128], index: 11, kind: output, shape index: {}]
  %s12 = sld [smem:[#allocation0]]
  $region54: #{tpu_custom_call.1} parent=0
    _
  %s14 = ssub.s32 1, %s12
  %s15 = scalar_select 0, %s14, %s12
  $region1: #{tpu_custom_call.1} parent=0
    #allocation2 [shape = 'u8[4096]{0}', space=vmem, size = 0x1000, scoped, tag = 'output window, operand 0, single buffered']
    #allocation3 [shape = 's32[1]{0}', space=sflag, size = 0x4, scoped, tag = 'scoped memory for tpu_custom_call.1']
    %16 = vsyncpa [#allocation3], 0
    // Predicated region
    $region2: #{tpu_custom_call.1} parent=1 // pred_check
      _
    $region3: #{tpu_custom_call.1} parent=1 // pred_check_branch
      %18 = sbr.rel (0) target = $region5
    $region4: #{tpu_custom_call.1} parent=1 // pred_region
      _
    $region5: #{tpu_custom_call.1} parent=1 // pred_fallthru
      _
    // Predicated region
    $region6: #{tpu_custom_call.1} parent=1 // pred_check
      _
    $region7: #{tpu_custom_call.1} parent=1 // pred_check_branch
      %20 = sbr.rel (0) target = $region9
    $region8: #{tpu_custom_call.1} parent=1 // pred_region
      _
    $region9: #{tpu_custom_call.1} parent=1 // pred_fallthru
      _
    // Predicated region
    $region10: #{tpu_custom_call.1} parent=1 // pred_check
      _
    $region11: #{tpu_custom_call.1} parent=1 // pred_check_branch
      %22 = sbr.rel (0) target = $region13
    $region12: #{tpu_custom_call.1} parent=1 // pred_region
      _
    $region13: #{tpu_custom_call.1} parent=1 // pred_fallthru
      _
    // Predicated region
    $region14: #{tpu_custom_call.1} parent=1 // pred_check
      _
    $region15: #{tpu_custom_call.1} parent=1 // pred_check_branch
      %24 = sbr.rel (0) target = $region17
    $region16: #{tpu_custom_call.1} parent=1 // pred_region
      _
    $region17: #{tpu_custom_call.1} parent=1 // pred_fallthru
      _
    // Predicated region
    $region18: #{tpu_custom_call.1} parent=1 // pred_check
      _
    $region19: #{tpu_custom_call.1} parent=1 // pred_check_branch
      %26 = sbr.rel (0) target = $region21
    $region20: #{tpu_custom_call.1} parent=1 // pred_region
      _
    $region21: #{tpu_custom_call.1} parent=1 // pred_fallthru
      _
    // Predicated region
    $region22: #{tpu_custom_call.1} parent=1 // pred_check
      _
    $region23: #{tpu_custom_call.1} parent=1 // pred_check_branch
      %28 = sbr.rel (0) target = $region25
    $region24: #{tpu_custom_call.1} parent=1 // pred_region
      _
    $region25: #{tpu_custom_call.1} parent=1 // pred_fallthru
      _
    // Predicated region
    $region26: #{tpu_custom_call.1} parent=1 // pred_check
      _
    $region27: #{tpu_custom_call.1} parent=1 // pred_check_branch
      %30 = sbr.rel (0) target = $region29
    $region28: #{tpu_custom_call.1} parent=1 // pred_region
      _
    $region29: #{tpu_custom_call.1} parent=1 // pred_fallthru
      _
    // Predicated region
    $region30: #{tpu_custom_call.1} parent=1 // pred_check
      _
    $region31: #{tpu_custom_call.1} parent=1 // pred_check_branch
      %32 = sbr.rel (0) target = $region33
    $region32: #{tpu_custom_call.1} parent=1 // pred_region
      _
    $region33: #{tpu_custom_call.1} parent=1 // pred_fallthru
      _
    // Predicated region
    $region34: #{tpu_custom_call.1} parent=1 // pred_check
      _
    $region35: #{tpu_custom_call.1} parent=1 // pred_check_branch
      %34 = sbr.rel (0) target = $region37
    $region36: #{tpu_custom_call.1} parent=1 // pred_region
      _
    $region37: #{tpu_custom_call.1} parent=1 // pred_fallthru
      _
    // Predicated region
    $region38: #{tpu_custom_call.1} parent=1 // pred_check
      _
    $region39: #{tpu_custom_call.1} parent=1 // pred_check_branch
      %36 = sbr.rel (0) target = $region41
    $region40: #{tpu_custom_call.1} parent=1 // pred_region
      _
    $region41: #{tpu_custom_call.1} parent=1 // pred_fallthru
      _
    // Predicated region
    $region42: #{tpu_custom_call.1} parent=1 // pred_check
      _
    $region43: #{tpu_custom_call.1} parent=1 // pred_check_branch
      %38 = sbr.rel (0) target = $region45
    $region44: #{tpu_custom_call.1} parent=1 // pred_region
      _
    $region45: #{tpu_custom_call.1} parent=1 // pred_fallthru
      _
    %v40 = vld [vmem:[%s0] sm:$0xff]
    %v41 = vtanh.pop %v40
    %v42 = vmul.f32 %v41, 2.0
    %v43 = vmul.f32 %v42, %v41
    %v44 = vsub.f32 %v43, 1.0
    %v45 = vmul.f32 %v42, %v44
    %v46 = vsub.f32 %v45, %v41
    %v47 = vmul.f32 %v42, %v46
    %v48 = vsub.f32 %v47, %v44
    %v49 = vld [vmem:[%s2] sm:$0x1]
    %v50 = vxor.u32 %v40, 2147483648
    %v51 = vmul.f32 %v50, 1.442695
    %v52 = vpow.pop %v51
    %v53 = vadd.f32 %v52, 1.0
    %v54 = vrcp.pop %v53
    %v55 = vmul.f32 1.0, %v54
    %v56 = vmul.f32 %v40, %v55
    %v57 = vpack.c.bf16 %v56, %v56
    %v58 = vld [vmem:[%s1] sm:$0xf]
    %v59 = vld [vmem:[%s1 + $0x4] sm:$0xf]
    %v60 = vld [vmem:[%s1 + $0x8] sm:$0xf]
    %v61 = vld [vmem:[%s1 + $0xc] sm:$0xf]
    %v62 = vld [vmem:[%s1 + $0x10] sm:$0xf]
    %v63 = vld [vmem:[%s1 + $0x14] sm:$0xf]
    %v64 = vld [vmem:[%s1 + $0x18] sm:$0xf]
    %v65 = vld [vmem:[%s1 + $0x1c] sm:$0xf]
    %v74 = vunpack.c.l.b16 %v58
    %v75 = vunpack.c.l.b16 %v59
    %v76 = vunpack.c.l.b16 %v60
    %v77 = vunpack.c.l.b16 %v61
    %v78 = vunpack.c.l.b16 %v62
    %v79 = vunpack.c.l.b16 %v63
    %v80 = vunpack.c.l.b16 %v64
    %v81 = vunpack.c.l.b16 %v65
    %v82 = vpack.c.b16 %v75, %v74
    %v83 = vpack.c.b16 %v77, %v76
    %v84 = vpack.c.b16 %v79, %v78
    %v85 = vpack.c.b16 %v81, %v80
    %vm90 = vcmask 523264
    %v92 = vsel %vm90, %v57, 0
    %94 = vmatprep.subr.bf16.mxu0 0
    %95 = vmatpush1.bf16.msra.mxu0 0
    %96 = vmatprep.subr.bf16.mxu0 0
    %97 = vmatpush1.bf16.msra.mxu0 0
    %98 = vmatprep.subr.bf16.mxu0 0
    %99 = vmatpush1.bf16.msra.mxu0 0
    %100 = vmatprep.subr.bf16.mxu0 0
    %101 = vmatpush1.bf16.msra.mxu0 0
    %102 = vmatprep.subr.bf16.mxu0 0
    %103 = vmatpush1.bf16.msra.mxu0 %v85
    %104 = vmatprep.subr.bf16.mxu0 0
    %105 = vmatpush1.bf16.msra.mxu0 %v84
    %106 = vmatprep.subr.bf16.mxu0 0
    %107 = vmatpush1.bf16.msra.mxu0 %v83
    %108 = vmatprep.subr.bf16.mxu0 0
    %109 = vmatpush1.bf16.msra.mxu0 %v82
    %110 = vmatprep.subr.bf16.mxu0 0
    %111 = vmatpush2.bf16.msra.mxu0 0
    %112 = vmatprep.subr.bf16.mxu0 0
    %113 = vmatpush2.bf16.msra.mxu0 0
    %114 = vmatprep.subr.bf16.mxu0 0
    %115 = vmatpush2.bf16.msra.mxu0 0
    %116 = vmatprep.subr.bf16.mxu0 0
    %117 = vmatpush2.bf16.msra.mxu0 0
    %118 = vmatprep.subr.bf16.mxu0 0
    %119 = vmatpush2.bf16.msra.mxu0 0
    %120 = vmatprep.subr.bf16.mxu0 0
    %121 = vmatpush2.bf16.msra.mxu0 0
    %122 = vmatprep.subr.bf16.mxu0 0
    %123 = vmatpush2.bf16.msra.mxu0 0
    %124 = vmatprep.subr.bf16.mxu0 0
    %125 = vmatpush2.bf16.msra.mxu0 0
    %126 = vmatprep.mubr.bf16.mxu0 0
    %127 = vmatmul.mubr.bf16.gmra.mxu0 %v92
    %v128 = vpop.f32.mrf.mxu0
    %v129 = vadd.f32 0.0, %v128
    %v130 = vpop.f32.mrf.mxu0
    %v131 = vpop.f32.mrf.mxu0
    %v132 = vpop.f32.mrf.mxu0
    %133 = vdwg.mxu0
    %v135 = vlaneseq
    %v136 = vshrl.u32 %v135, 7
    %v137 = vsub.s32 0, %v136
    %v138 = vrot.slane %v49, %v137
    %v140 = vadd.f32 %v138, %v129
    %v141 = vpack.c.bf16 %v41, %v41
    %s142 = scalar_lea.vmem %s1, 32
    %v143 = vld [vmem:[%s142] sm:$0xf]
    %v144 = vld [vmem:[%s142 + $0x4] sm:$0xf]
    %v145 = vld [vmem:[%s142 + $0x8] sm:$0xf]
    %v146 = vld [vmem:[%s142 + $0xc] sm:$0xf]
    %v147 = vld [vmem:[%s142 + $0x10] sm:$0xf]
    %v148 = vld [vmem:[%s142 + $0x14] sm:$0xf]
    %v149 = vld [vmem:[%s142 + $0x18] sm:$0xf]
    %v150 = vld [vmem:[%s142 + $0x1c] sm:$0xf]
    %v159 = vunpack.c.l.b16 %v143
    %v160 = vunpack.c.l.b16 %v144
    %v161 = vunpack.c.l.b16 %v145
    %v162 = vunpack.c.l.b16 %v146
    %v163 = vunpack.c.l.b16 %v147
    %v164 = vunpack.c.l.b16 %v148
    %v165 = vunpack.c.l.b16 %v149
    %v166 = vunpack.c.l.b16 %v150
    %v167 = vpack.c.b16 %v160, %v159
    %v168 = vpack.c.b16 %v162, %v161
    %v169 = vpack.c.b16 %v164, %v163
    %v170 = vpack.c.b16 %v166, %v165
    %v176 = vsel %vm90, %v141, 0
    %178 = vmatprep.subr.bf16.mxu0 0
    %179 = vmatpush1.bf16.msra.mxu0 0
    %180 = vmatprep.subr.bf16.mxu0 0
    %181 = vmatpush1.bf16.msra.mxu0 0
    %182 = vmatprep.subr.bf16.mxu0 0
    %183 = vmatpush1.bf16.msra.mxu0 0
    %184 = vmatprep.subr.bf16.mxu0 0
    %185 = vmatpush1.bf16.msra.mxu0 0
    %186 = vmatprep.subr.bf16.mxu0 0
    %187 = vmatpush1.bf16.msra.mxu0 %v170
    %188 = vmatprep.subr.bf16.mxu0 0
    %189 = vmatpush1.bf16.msra.mxu0 %v169
    %190 = vmatprep.subr.bf16.mxu0 0
    %191 = vmatpush1.bf16.msra.mxu0 %v168
    %192 = vmatprep.subr.bf16.mxu0 0
    %193 = vmatpush1.bf16.msra.mxu0 %v167
    %194 = vmatprep.subr.bf16.mxu0 0
    %195 = vmatpush2.bf16.msra.mxu0 0
    %196 = vmatprep.subr.bf16.mxu0 0
    %197 = vmatpush2.bf16.msra.mxu0 0
    %198 = vmatprep.subr.bf16.mxu0 0
    %199 = vmatpush2.bf16.msra.mxu0 0
    %200 = vmatprep.subr.bf16.mxu0 0
    %201 = vmatpush2.bf16.msra.mxu0 0
    %202 = vmatprep.subr.bf16.mxu0 0
    %203 = vmatpush2.bf16.msra.mxu0 0
    %204 = vmatprep.subr.bf16.mxu0 0
    %205 = vmatpush2.bf16.msra.mxu0 0
    %206 = vmatprep.subr.bf16.mxu0 0
    %207 = vmatpush2.bf16.msra.mxu0 0
    %208 = vmatprep.subr.bf16.mxu0 0
    %209 = vmatpush2.bf16.msra.mxu0 0
    %210 = vmatprep.mubr.bf16.mxu0 0
    %211 = vmatmul.mubr.bf16.gmra.mxu0 %v176
    %v212 = vpop.f32.mrf.mxu0
    %v213 = vadd.f32 0.0, %v212
    %v214 = vpop.f32.mrf.mxu0
    %v215 = vpop.f32.mrf.mxu0
    %v216 = vpop.f32.mrf.mxu0
    %217 = vdwg.mxu0
    %v218 = vadd.f32 %v140, %v213
    %v219 = vpack.c.bf16 %v44, %v44
    %s220 = scalar_lea.vmem %s1, 64
    %v221 = vld [vmem:[%s220] sm:$0xf]
    %v222 = vld [vmem:[%s220 + $0x4] sm:$0xf]
    %v223 = vld [vmem:[%s220 + $0x8] sm:$0xf]
    %v224 = vld [vmem:[%s220 + $0xc] sm:$0xf]
    %v225 = vld [vmem:[%s220 + $0x10] sm:$0xf]
    %v226 = vld [vmem:[%s220 + $0x14] sm:$0xf]
    %v227 = vld [vmem:[%s220 + $0x18] sm:$0xf]
    %v228 = vld [vmem:[%s220 + $0x1c] sm:$0xf]
    %v237 = vunpack.c.l.b16 %v221
    %v238 = vunpack.c.l.b16 %v222
    %v239 = vunpack.c.l.b16 %v223
    %v240 = vunpack.c.l.b16 %v224
    %v241 = vunpack.c.l.b16 %v225
    %v242 = vunpack.c.l.b16 %v226
    %v243 = vunpack.c.l.b16 %v227
    %v244 = vunpack.c.l.b16 %v228
    %v245 = vpack.c.b16 %v238, %v237
    %v246 = vpack.c.b16 %v240, %v239
    %v247 = vpack.c.b16 %v242, %v241
    %v248 = vpack.c.b16 %v244, %v243
    %v254 = vsel %vm90, %v219, 0
    %256 = vmatprep.subr.bf16.mxu0 0
    %257 = vmatpush1.bf16.msra.mxu0 0
    %258 = vmatprep.subr.bf16.mxu0 0
    %259 = vmatpush1.bf16.msra.mxu0 0
    %260 = vmatprep.subr.bf16.mxu0 0
    %261 = vmatpush1.bf16.msra.mxu0 0
    %262 = vmatprep.subr.bf16.mxu0 0
    %263 = vmatpush1.bf16.msra.mxu0 0
    %264 = vmatprep.subr.bf16.mxu0 0
    %265 = vmatpush1.bf16.msra.mxu0 %v248
    %266 = vmatprep.subr.bf16.mxu0 0
    %267 = vmatpush1.bf16.msra.mxu0 %v247
    %268 = vmatprep.subr.bf16.mxu0 0
    %269 = vmatpush1.bf16.msra.mxu0 %v246
    %270 = vmatprep.subr.bf16.mxu0 0
    %271 = vmatpush1.bf16.msra.mxu0 %v245
    %272 = vmatprep.subr.bf16.mxu0 0
    %273 = vmatpush2.bf16.msra.mxu0 0
    %274 = vmatprep.subr.bf16.mxu0 0
    %275 = vmatpush2.bf16.msra.mxu0 0
    %276 = vmatprep.subr.bf16.mxu0 0
    %277 = vmatpush2.bf16.msra.mxu0 0
    %278 = vmatprep.subr.bf16.mxu0 0
    %279 = vmatpush2.bf16.msra.mxu0 0
    %280 = vmatprep.subr.bf16.mxu0 0
    %281 = vmatpush2.bf16.msra.mxu0 0
    %282 = vmatprep.subr.bf16.mxu0 0
    %283 = vmatpush2.bf16.msra.mxu0 0
    %284 = vmatprep.subr.bf16.mxu0 0
    %285 = vmatpush2.bf16.msra.mxu0 0
    %286 = vmatprep.subr.bf16.mxu0 0
    %287 = vmatpush2.bf16.msra.mxu0 0
    %288 = vmatprep.mubr.bf16.mxu0 0
    %289 = vmatmul.mubr.bf16.gmra.mxu0 %v254
    %v290 = vpop.f32.mrf.mxu0
    %v291 = vadd.f32 0.0, %v290
    %v292 = vpop.f32.mrf.mxu0
    %v293 = vpop.f32.mrf.mxu0
    %v294 = vpop.f32.mrf.mxu0
    %295 = vdwg.mxu0
    %v296 = vadd.f32 %v218, %v291
    %v297 = vpack.c.bf16 %v46, %v46
    %s298 = scalar_lea.vmem %s1, 96
    %v299 = vld [vmem:[%s298] sm:$0xf]
    %v300 = vld [vmem:[%s298 + $0x4] sm:$0xf]
    %v301 = vld [vmem:[%s298 + $0x8] sm:$0xf]
    %v302 = vld [vmem:[%s298 + $0xc] sm:$0xf]
    %v303 = vld [vmem:[%s298 + $0x10] sm:$0xf]
    %v304 = vld [vmem:[%s298 + $0x14] sm:$0xf]
    %v305 = vld [vmem:[%s298 + $0x18] sm:$0xf]
    %v306 = vld [vmem:[%s298 + $0x1c] sm:$0xf]
    %v315 = vunpack.c.l.b16 %v299
    %v316 = vunpack.c.l.b16 %v300
    %v317 = vunpack.c.l.b16 %v301
    %v318 = vunpack.c.l.b16 %v302
    %v319 = vunpack.c.l.b16 %v303
    %v320 = vunpack.c.l.b16 %v304
    %v321 = vunpack.c.l.b16 %v305
    %v322 = vunpack.c.l.b16 %v306
    %v323 = vpack.c.b16 %v316, %v315
    %v324 = vpack.c.b16 %v318, %v317
    %v325 = vpack.c.b16 %v320, %v319
    %v326 = vpack.c.b16 %v322, %v321
    %v332 = vsel %vm90, %v297, 0
    %334 = vmatprep.subr.bf16.mxu0 0
    %335 = vmatpush1.bf16.msra.mxu0 0
    %336 = vmatprep.subr.bf16.mxu0 0
    %337 = vmatpush1.bf16.msra.mxu0 0
    %338 = vmatprep.subr.bf16.mxu0 0
    %339 = vmatpush1.bf16.msra.mxu0 0
    %340 = vmatprep.subr.bf16.mxu0 0
    %341 = vmatpush1.bf16.msra.mxu0 0
    %342 = vmatprep.subr.bf16.mxu0 0
    %343 = vmatpush1.bf16.msra.mxu0 %v326
    %344 = vmatprep.subr.bf16.mxu0 0
    %345 = vmatpush1.bf16.msra.mxu0 %v325
    %346 = vmatprep.subr.bf16.mxu0 0
    %347 = vmatpush1.bf16.msra.mxu0 %v324
    %348 = vmatprep.subr.bf16.mxu0 0
    %349 = vmatpush1.bf16.msra.mxu0 %v323
    %350 = vmatprep.subr.bf16.mxu0 0
    %351 = vmatpush2.bf16.msra.mxu0 0
    %352 = vmatprep.subr.bf16.mxu0 0
    %353 = vmatpush2.bf16.msra.mxu0 0
    %354 = vmatprep.subr.bf16.mxu0 0
    %355 = vmatpush2.bf16.msra.mxu0 0
    %356 = vmatprep.subr.bf16.mxu0 0
    %357 = vmatpush2.bf16.msra.mxu0 0
    %358 = vmatprep.subr.bf16.mxu0 0
    %359 = vmatpush2.bf16.msra.mxu0 0
    %360 = vmatprep.subr.bf16.mxu0 0
    %361 = vmatpush2.bf16.msra.mxu0 0
    %362 = vmatprep.subr.bf16.mxu0 0
    %363 = vmatpush2.bf16.msra.mxu0 0
    %364 = vmatprep.subr.bf16.mxu0 0
    %365 = vmatpush2.bf16.msra.mxu0 0
    %366 = vmatprep.mubr.bf16.mxu0 0
    %367 = vmatmul.mubr.bf16.gmra.mxu0 %v332
    %v368 = vpop.f32.mrf.mxu0
    %v369 = vadd.f32 0.0, %v368
    %v370 = vpop.f32.mrf.mxu0
    %v371 = vpop.f32.mrf.mxu0
    %v372 = vpop.f32.mrf.mxu0
    %373 = vdwg.mxu0
    %v374 = vadd.f32 %v296, %v369
    %v375 = vpack.c.bf16 %v48, %v48
    %s376 = scalar_lea.vmem %s1, 128
    %v377 = vld [vmem:[%s376] sm:$0xf]
    %v378 = vld [vmem:[%s376 + $0x4] sm:$0xf]
    %v379 = vld [vmem:[%s376 + $0x8] sm:$0xf]
    %v380 = vld [vmem:[%s376 + $0xc] sm:$0xf]
    %v381 = vld [vmem:[%s376 + $0x10] sm:$0xf]
    %v382 = vld [vmem:[%s376 + $0x14] sm:$0xf]
    %v383 = vld [vmem:[%s376 + $0x18] sm:$0xf]
    %v384 = vld [vmem:[%s376 + $0x1c] sm:$0xf]
    %v393 = vunpack.c.l.b16 %v377
    %v394 = vunpack.c.l.b16 %v378
    %v395 = vunpack.c.l.b16 %v379
    %v396 = vunpack.c.l.b16 %v380
    %v397 = vunpack.c.l.b16 %v381
    %v398 = vunpack.c.l.b16 %v382
    %v399 = vunpack.c.l.b16 %v383
    %v400 = vunpack.c.l.b16 %v384
    %v401 = vpack.c.b16 %v394, %v393
    %v402 = vpack.c.b16 %v396, %v395
    %v403 = vpack.c.b16 %v398, %v397
    %v404 = vpack.c.b16 %v400, %v399
    %v410 = vsel %vm90, %v375, 0
    %412 = vmatprep.subr.bf16.mxu0 0
    %413 = vmatpush1.bf16.msra.mxu0 0
    %414 = vmatprep.subr.bf16.mxu0 0
    %415 = vmatpush1.bf16.msra.mxu0 0
    %416 = vmatprep.subr.bf16.mxu0 0
    %417 = vmatpush1.bf16.msra.mxu0 0
    %418 = vmatprep.subr.bf16.mxu0 0
    %419 = vmatpush1.bf16.msra.mxu0 0
    %420 = vmatprep.subr.bf16.mxu0 0
    %421 = vmatpush1.bf16.msra.mxu0 %v404
    %422 = vmatprep.subr.bf16.mxu0 0
    %423 = vmatpush1.bf16.msra.mxu0 %v403
    %424 = vmatprep.subr.bf16.mxu0 0
    %425 = vmatpush1.bf16.msra.mxu0 %v402
    %426 = vmatprep.subr.bf16.mxu0 0
    %427 = vmatpush1.bf16.msra.mxu0 %v401
    %428 = vmatprep.subr.bf16.mxu0 0
    %429 = vmatpush2.bf16.msra.mxu0 0
    %430 = vmatprep.subr.bf16.mxu0 0
    %431 = vmatpush2.bf16.msra.mxu0 0
    %432 = vmatprep.subr.bf16.mxu0 0
    %433 = vmatpush2.bf16.msra.mxu0 0
    %434 = vmatprep.subr.bf16.mxu0 0
    %435 = vmatpush2.bf16.msra.mxu0 0
    %436 = vmatprep.subr.bf16.mxu0 0
    %437 = vmatpush2.bf16.msra.mxu0 0
    %438 = vmatprep.subr.bf16.mxu0 0
    %439 = vmatpush2.bf16.msra.mxu0 0
    %440 = vmatprep.subr.bf16.mxu0 0
    %441 = vmatpush2.bf16.msra.mxu0 0
    %442 = vmatprep.subr.bf16.mxu0 0
    %443 = vmatpush2.bf16.msra.mxu0 0
    %444 = vmatprep.mubr.bf16.mxu0 0
    %445 = vmatmul.mubr.bf16.gmra.mxu0 %v410
    %v446 = vpop.f32.mrf.mxu0
    %v447 = vadd.f32 0.0, %v446
    %v448 = vpop.f32.mrf.mxu0
    %v449 = vpop.f32.mrf.mxu0
    %v450 = vpop.f32.mrf.mxu0
    %451 = vdwg.mxu0
    %v452 = vadd.f32 %v374, %v447
    %v453 = vld [vmem:[%s3] sm:$0x1]
    %v454 = vld [vmem:[%s4] sm:$0x1]
    %vm455 = vcmask 261120
    %v456 = vsel %vm455, %v452, 0.0
    %457 = vadd.xlane.f32.xlu0 %v456
    %v458 = vpop.xlane.xlu0 %457
    %v459 = vrcp.pop 32.0
    %v460 = vmul.f32 %v458, %v459
    %v461 = vsub.f32 %v452, %v460
    %v462 = vmul.f32 %v461, %v461
    %v463 = vsel %vm455, %v462, 0.0
    %464 = vadd.xlane.f32.xlu0 %v463
    %v465 = vpop.xlane.xlu0 %464
    %v466 = vmul.f32 %v465, %v459
    %v467 = vadd.f32 %v466, 1e-05
    %v468 = vrsqrt.pop %v467
    %v469 = vmul.f32 %v461, %v468
    %v471 = vlaneseq
    %v472 = vshrl.u32 %v471, 7
    %v473 = vsub.s32 0, %v472
    %v474 = vrot.slane %v453, %v473
    %v476 = vmul.f32 %v469, %v474
    %v478 = vlaneseq
    %v479 = vshrl.u32 %v478, 7
    %v480 = vsub.s32 0, %v479
    %v481 = vrot.slane %v454, %v480
    %v483 = vadd.f32 %v476, %v481
    %v484 = vtanh.pop %v483
    %v485 = vmul.f32 %v484, 2.0
    %v486 = vmul.f32 %v485, %v484
    %v487 = vsub.f32 %v486, 1.0
    %v488 = vmul.f32 %v485, %v487
    %v489 = vsub.f32 %v488, %v484
    %v490 = vmul.f32 %v485, %v489
    %v491 = vsub.f32 %v490, %v487
    %v492 = vld [vmem:[%s6] sm:$0x1]
    %v493 = vxor.u32 %v483, 2147483648
    %v494 = vmul.f32 %v493, 1.442695
    %v495 = vpow.pop %v494
    %v496 = vadd.f32 %v495, 1.0
    %v497 = vrcp.pop %v496
    %v498 = vmul.f32 1.0, %v497
    %v499 = vmul.f32 %v483, %v498
    %v500 = vpack.c.bf16 %v499, %v499
    %v501 = vld [vmem:[%s5] sm:$0xf]
    %v502 = vld [vmem:[%s5 + $0x4] sm:$0xf]
    %v503 = vld [vmem:[%s5 + $0x8] sm:$0xf]
    %v504 = vld [vmem:[%s5 + $0xc] sm:$0xf]
    %v509 = vunpack.c.l.b16 %v501
    %v510 = vunpack.c.l.b16 %v502
    %v511 = vunpack.c.l.b16 %v503
    %v512 = vunpack.c.l.b16 %v504
    %v513 = vpack.c.b16 %v510, %v509
    %v514 = vpack.c.b16 %v512, %v511
    %v518 = vsel %vm455, %v500, 0
    %520 = vmatprep.subr.bf16.mxu0 0
    %521 = vmatpush1.bf16.msra.mxu0 0
    %522 = vmatprep.subr.bf16.mxu0 0
    %523 = vmatpush1.bf16.msra.mxu0 0
    %524 = vmatprep.subr.bf16.mxu0 0
    %525 = vmatpush1.bf16.msra.mxu0 0
    %526 = vmatprep.subr.bf16.mxu0 0
    %527 = vmatpush1.bf16.msra.mxu0 0
    %528 = vmatprep.subr.bf16.mxu0 0
    %529 = vmatpush1.bf16.msra.mxu0 0
    %530 = vmatprep.subr.bf16.mxu0 0
    %531 = vmatpush1.bf16.msra.mxu0 0
    %532 = vmatprep.subr.bf16.mxu0 0
    %533 = vmatpush1.bf16.msra.mxu0 %v514
    %534 = vmatprep.subr.bf16.mxu0 0
    %535 = vmatpush1.bf16.msra.mxu0 %v513
    %536 = vmatprep.subr.bf16.mxu0 0
    %537 = vmatpush2.bf16.msra.mxu0 0
    %538 = vmatprep.subr.bf16.mxu0 0
    %539 = vmatpush2.bf16.msra.mxu0 0
    %540 = vmatprep.subr.bf16.mxu0 0
    %541 = vmatpush2.bf16.msra.mxu0 0
    %542 = vmatprep.subr.bf16.mxu0 0
    %543 = vmatpush2.bf16.msra.mxu0 0
    %544 = vmatprep.subr.bf16.mxu0 0
    %545 = vmatpush2.bf16.msra.mxu0 0
    %546 = vmatprep.subr.bf16.mxu0 0
    %547 = vmatpush2.bf16.msra.mxu0 0
    %548 = vmatprep.subr.bf16.mxu0 0
    %549 = vmatpush2.bf16.msra.mxu0 0
    %550 = vmatprep.subr.bf16.mxu0 0
    %551 = vmatpush2.bf16.msra.mxu0 0
    %552 = vmatprep.mubr.bf16.mxu0 0
    %553 = vmatmul.mubr.bf16.gmra.mxu0 %v518
    %v554 = vpop.f32.mrf.mxu0
    %v555 = vadd.f32 0.0, %v554
    %v556 = vpop.f32.mrf.mxu0
    %v557 = vpop.f32.mrf.mxu0
    %v558 = vpop.f32.mrf.mxu0
    %559 = vdwg.mxu0
    %v561 = vlaneseq
    %v562 = vshrl.u32 %v561, 7
    %v563 = vsub.s32 0, %v562
    %v564 = vrot.slane %v492, %v563
    %v566 = vadd.f32 %v564, %v555
    %v567 = vpack.c.bf16 %v484, %v484
    %s568 = scalar_lea.vmem %s5, 16
    %v569 = vld [vmem:[%s568] sm:$0xf]
    %v570 = vld [vmem:[%s568 + $0x4] sm:$0xf]
    %v571 = vld [vmem:[%s568 + $0x8] sm:$0xf]
    %v572 = vld [vmem:[%s568 + $0xc] sm:$0xf]
    %v577 = vunpack.c.l.b16 %v569
    %v578 = vunpack.c.l.b16 %v570
    %v579 = vunpack.c.l.b16 %v571
    %v580 = vunpack.c.l.b16 %v572
    %v581 = vpack.c.b16 %v578, %v577
    %v582 = vpack.c.b16 %v580, %v579
    %v586 = vsel %vm455, %v567, 0
    %588 = vmatprep.subr.bf16.mxu0 0
    %589 = vmatpush1.bf16.msra.mxu0 0
    %590 = vmatprep.subr.bf16.mxu0 0
    %591 = vmatpush1.bf16.msra.mxu0 0
    %592 = vmatprep.subr.bf16.mxu0 0
    %593 = vmatpush1.bf16.msra.mxu0 0
    %594 = vmatprep.subr.bf16.mxu0 0
    %595 = vmatpush1.bf16.msra.mxu0 0
    %596 = vmatprep.subr.bf16.mxu0 0
    %597 = vmatpush1.bf16.msra.mxu0 0
    %598 = vmatprep.subr.bf16.mxu0 0
    %599 = vmatpush1.bf16.msra.mxu0 0
    %600 = vmatprep.subr.bf16.mxu0 0
    %601 = vmatpush1.bf16.msra.mxu0 %v582
    %602 = vmatprep.subr.bf16.mxu0 0
    %603 = vmatpush1.bf16.msra.mxu0 %v581
    %604 = vmatprep.subr.bf16.mxu0 0
    %605 = vmatpush2.bf16.msra.mxu0 0
    %606 = vmatprep.subr.bf16.mxu0 0
    %607 = vmatpush2.bf16.msra.mxu0 0
    %608 = vmatprep.subr.bf16.mxu0 0
    %609 = vmatpush2.bf16.msra.mxu0 0
    %610 = vmatprep.subr.bf16.mxu0 0
    %611 = vmatpush2.bf16.msra.mxu0 0
    %612 = vmatprep.subr.bf16.mxu0 0
    %613 = vmatpush2.bf16.msra.mxu0 0
    %614 = vmatprep.subr.bf16.mxu0 0
    %615 = vmatpush2.bf16.msra.mxu0 0
    %616 = vmatprep.subr.bf16.mxu0 0
    %617 = vmatpush2.bf16.msra.mxu0 0
    %618 = vmatprep.subr.bf16.mxu0 0
    %619 = vmatpush2.bf16.msra.mxu0 0
    %620 = vmatprep.mubr.bf16.mxu0 0
    %621 = vmatmul.mubr.bf16.gmra.mxu0 %v586
    %v622 = vpop.f32.mrf.mxu0
    %v623 = vadd.f32 0.0, %v622
    %v624 = vpop.f32.mrf.mxu0
    %v625 = vpop.f32.mrf.mxu0
    %v626 = vpop.f32.mrf.mxu0
    %627 = vdwg.mxu0
    %v628 = vadd.f32 %v566, %v623
    %v629 = vpack.c.bf16 %v487, %v487
    %s630 = scalar_lea.vmem %s5, 32
    %v631 = vld [vmem:[%s630] sm:$0xf]
    %v632 = vld [vmem:[%s630 + $0x4] sm:$0xf]
    %v633 = vld [vmem:[%s630 + $0x8] sm:$0xf]
    %v634 = vld [vmem:[%s630 + $0xc] sm:$0xf]
    %v639 = vunpack.c.l.b16 %v631
    %v640 = vunpack.c.l.b16 %v632
    %v641 = vunpack.c.l.b16 %v633
    %v642 = vunpack.c.l.b16 %v634
    %v643 = vpack.c.b16 %v640, %v639
    %v644 = vpack.c.b16 %v642, %v641
    %v648 = vsel %vm455, %v629, 0
    %650 = vmatprep.subr.bf16.mxu0 0
    %651 = vmatpush1.bf16.msra.mxu0 0
    %652 = vmatprep.subr.bf16.mxu0 0
    %653 = vmatpush1.bf16.msra.mxu0 0
    %654 = vmatprep.subr.bf16.mxu0 0
    %655 = vmatpush1.bf16.msra.mxu0 0
    %656 = vmatprep.subr.bf16.mxu0 0
    %657 = vmatpush1.bf16.msra.mxu0 0
    %658 = vmatprep.subr.bf16.mxu0 0
    %659 = vmatpush1.bf16.msra.mxu0 0
    %660 = vmatprep.subr.bf16.mxu0 0
    %661 = vmatpush1.bf16.msra.mxu0 0
    %662 = vmatprep.subr.bf16.mxu0 0
    %663 = vmatpush1.bf16.msra.mxu0 %v644
    %664 = vmatprep.subr.bf16.mxu0 0
    %665 = vmatpush1.bf16.msra.mxu0 %v643
    %666 = vmatprep.subr.bf16.mxu0 0
    %667 = vmatpush2.bf16.msra.mxu0 0
    %668 = vmatprep.subr.bf16.mxu0 0
    %669 = vmatpush2.bf16.msra.mxu0 0
    %670 = vmatprep.subr.bf16.mxu0 0
    %671 = vmatpush2.bf16.msra.mxu0 0
    %672 = vmatprep.subr.bf16.mxu0 0
    %673 = vmatpush2.bf16.msra.mxu0 0
    %674 = vmatprep.subr.bf16.mxu0 0
    %675 = vmatpush2.bf16.msra.mxu0 0
    %676 = vmatprep.subr.bf16.mxu0 0
    %677 = vmatpush2.bf16.msra.mxu0 0
    %678 = vmatprep.subr.bf16.mxu0 0
    %679 = vmatpush2.bf16.msra.mxu0 0
    %680 = vmatprep.subr.bf16.mxu0 0
    %681 = vmatpush2.bf16.msra.mxu0 0
    %682 = vmatprep.mubr.bf16.mxu0 0
    %683 = vmatmul.mubr.bf16.gmra.mxu0 %v648
    %v684 = vpop.f32.mrf.mxu0
    %v685 = vadd.f32 0.0, %v684
    %v686 = vpop.f32.mrf.mxu0
    %v687 = vpop.f32.mrf.mxu0
    %v688 = vpop.f32.mrf.mxu0
    %689 = vdwg.mxu0
    %v690 = vadd.f32 %v628, %v685
    %v691 = vpack.c.bf16 %v489, %v489
    %s692 = scalar_lea.vmem %s5, 48
    %v693 = vld [vmem:[%s692] sm:$0xf]
    %v694 = vld [vmem:[%s692 + $0x4] sm:$0xf]
    %v695 = vld [vmem:[%s692 + $0x8] sm:$0xf]
    %v696 = vld [vmem:[%s692 + $0xc] sm:$0xf]
    %v701 = vunpack.c.l.b16 %v693
    %v702 = vunpack.c.l.b16 %v694
    %v703 = vunpack.c.l.b16 %v695
    %v704 = vunpack.c.l.b16 %v696
    %v705 = vpack.c.b16 %v702, %v701
    %v706 = vpack.c.b16 %v704, %v703
    %v710 = vsel %vm455, %v691, 0
    %712 = vmatprep.subr.bf16.mxu0 0
    %713 = vmatpush1.bf16.msra.mxu0 0
    %714 = vmatprep.subr.bf16.mxu0 0
    %715 = vmatpush1.bf16.msra.mxu0 0
    %716 = vmatprep.subr.bf16.mxu0 0
    %717 = vmatpush1.bf16.msra.mxu0 0
    %718 = vmatprep.subr.bf16.mxu0 0
    %719 = vmatpush1.bf16.msra.mxu0 0
    %720 = vmatprep.subr.bf16.mxu0 0
    %721 = vmatpush1.bf16.msra.mxu0 0
    %722 = vmatprep.subr.bf16.mxu0 0
    %723 = vmatpush1.bf16.msra.mxu0 0
    %724 = vmatprep.subr.bf16.mxu0 0
    %725 = vmatpush1.bf16.msra.mxu0 %v706
    %726 = vmatprep.subr.bf16.mxu0 0
    %727 = vmatpush1.bf16.msra.mxu0 %v705
    %728 = vmatprep.subr.bf16.mxu0 0
    %729 = vmatpush2.bf16.msra.mxu0 0
    %730 = vmatprep.subr.bf16.mxu0 0
    %731 = vmatpush2.bf16.msra.mxu0 0
    %732 = vmatprep.subr.bf16.mxu0 0
    %733 = vmatpush2.bf16.msra.mxu0 0
    %734 = vmatprep.subr.bf16.mxu0 0
    %735 = vmatpush2.bf16.msra.mxu0 0
    %736 = vmatprep.subr.bf16.mxu0 0
    %737 = vmatpush2.bf16.msra.mxu0 0
    %738 = vmatprep.subr.bf16.mxu0 0
    %739 = vmatpush2.bf16.msra.mxu0 0
    %740 = vmatprep.subr.bf16.mxu0 0
    %741 = vmatpush2.bf16.msra.mxu0 0
    %742 = vmatprep.subr.bf16.mxu0 0
    %743 = vmatpush2.bf16.msra.mxu0 0
    %744 = vmatprep.mubr.bf16.mxu0 0
    %745 = vmatmul.mubr.bf16.gmra.mxu0 %v710
    %v746 = vpop.f32.mrf.mxu0
    %v747 = vadd.f32 0.0, %v746
    %v748 = vpop.f32.mrf.mxu0
    %v749 = vpop.f32.mrf.mxu0
    %v750 = vpop.f32.mrf.mxu0
    %751 = vdwg.mxu0
    %v752 = vadd.f32 %v690, %v747
    %v753 = vpack.c.bf16 %v491, %v491
    %s754 = scalar_lea.vmem %s5, 64
    %v755 = vld [vmem:[%s754] sm:$0xf]
    %v756 = vld [vmem:[%s754 + $0x4] sm:$0xf]
    %v757 = vld [vmem:[%s754 + $0x8] sm:$0xf]
    %v758 = vld [vmem:[%s754 + $0xc] sm:$0xf]
    %v763 = vunpack.c.l.b16 %v755
    %v764 = vunpack.c.l.b16 %v756
    %v765 = vunpack.c.l.b16 %v757
    %v766 = vunpack.c.l.b16 %v758
    %v767 = vpack.c.b16 %v764, %v763
    %v768 = vpack.c.b16 %v766, %v765
    %v772 = vsel %vm455, %v753, 0
    %774 = vmatprep.subr.bf16.mxu0 0
    %775 = vmatpush1.bf16.msra.mxu0 0
    %776 = vmatprep.subr.bf16.mxu0 0
    %777 = vmatpush1.bf16.msra.mxu0 0
    %778 = vmatprep.subr.bf16.mxu0 0
    %779 = vmatpush1.bf16.msra.mxu0 0
    %780 = vmatprep.subr.bf16.mxu0 0
    %781 = vmatpush1.bf16.msra.mxu0 0
    %782 = vmatprep.subr.bf16.mxu0 0
    %783 = vmatpush1.bf16.msra.mxu0 0
    %784 = vmatprep.subr.bf16.mxu0 0
    %785 = vmatpush1.bf16.msra.mxu0 0
    %786 = vmatprep.subr.bf16.mxu0 0
    %787 = vmatpush1.bf16.msra.mxu0 %v768
    %788 = vmatprep.subr.bf16.mxu0 0
    %789 = vmatpush1.bf16.msra.mxu0 %v767
    %790 = vmatprep.subr.bf16.mxu0 0
    %791 = vmatpush2.bf16.msra.mxu0 0
    %792 = vmatprep.subr.bf16.mxu0 0
    %793 = vmatpush2.bf16.msra.mxu0 0
    %794 = vmatprep.subr.bf16.mxu0 0
    %795 = vmatpush2.bf16.msra.mxu0 0
    %796 = vmatprep.subr.bf16.mxu0 0
    %797 = vmatpush2.bf16.msra.mxu0 0
    %798 = vmatprep.subr.bf16.mxu0 0
    %799 = vmatpush2.bf16.msra.mxu0 0
    %800 = vmatprep.subr.bf16.mxu0 0
    %801 = vmatpush2.bf16.msra.mxu0 0
    %802 = vmatprep.subr.bf16.mxu0 0
    %803 = vmatpush2.bf16.msra.mxu0 0
    %804 = vmatprep.subr.bf16.mxu0 0
    %805 = vmatpush2.bf16.msra.mxu0 0
    %806 = vmatprep.mubr.bf16.mxu0 0
    %807 = vmatmul.mubr.bf16.gmra.mxu0 %v772
    %v808 = vpop.f32.mrf.mxu0
    %v809 = vadd.f32 0.0, %v808
    %v810 = vpop.f32.mrf.mxu0
    %v811 = vpop.f32.mrf.mxu0
    %v812 = vpop.f32.mrf.mxu0
    %813 = vdwg.mxu0
    %v814 = vadd.f32 %v752, %v809
    %v815 = vld [vmem:[%s7] sm:$0x1]
    %v816 = vld [vmem:[%s8] sm:$0x1]
    %vm817 = vcmask 130048
    %v818 = vsel %vm817, %v814, 0.0
    %819 = vadd.xlane.f32.xlu0 %v818
    %v820 = vpop.xlane.xlu0 %819
    %v821 = vrcp.pop 16.0
    %v822 = vmul.f32 %v820, %v821
    %v823 = vsub.f32 %v814, %v822
    %v824 = vmul.f32 %v823, %v823
    %v825 = vsel %vm817, %v824, 0.0
    %826 = vadd.xlane.f32.xlu0 %v825
    %v827 = vpop.xlane.xlu0 %826
    %v828 = vmul.f32 %v827, %v821
    %v829 = vadd.f32 %v828, 1e-05
    %v830 = vrsqrt.pop %v829
    %v831 = vmul.f32 %v823, %v830
    %v833 = vlaneseq
    %v834 = vshrl.u32 %v833, 7
    %v835 = vsub.s32 0, %v834
    %v836 = vrot.slane %v815, %v835
    %v838 = vmul.f32 %v831, %v836
    %v840 = vlaneseq
    %v841 = vshrl.u32 %v840, 7
    %v842 = vsub.s32 0, %v841
    %v843 = vrot.slane %v816, %v842
    %v845 = vadd.f32 %v838, %v843
    %v846 = vtanh.pop %v845
    %v847 = vmul.f32 %v846, 2.0
    %v848 = vmul.f32 %v847, %v846
    %v849 = vsub.f32 %v848, 1.0
    %v850 = vmul.f32 %v847, %v849
    %v851 = vsub.f32 %v850, %v846
    %v852 = vmul.f32 %v847, %v851
    %v853 = vsub.f32 %v852, %v849
    %v854 = vld [vmem:[%s10] sm:$0x1]
    %v855 = vxor.u32 %v845, 2147483648
    %v856 = vmul.f32 %v855, 1.442695
    %v857 = vpow.pop %v856
    %v858 = vadd.f32 %v857, 1.0
    %v859 = vrcp.pop %v858
    %v860 = vmul.f32 1.0, %v859
    %v861 = vmul.f32 %v845, %v860
    %v862 = vpack.c.bf16 %v861, %v861
    %v863 = vld [vmem:[%s9] sm:$0xf]
    %v864 = vld [vmem:[%s9 + $0x4] sm:$0xf]
    %v867 = vunpack.c.l.b16 %v863
    %v868 = vunpack.c.l.b16 %v864
    %v869 = vpack.c.b16 %v868, %v867
    %v872 = vsel %vm817, %v862, 0
    %874 = vmatprep.subr.bf16.mxu0 0
    %875 = vmatpush1.bf16.msra.mxu0 0
    %876 = vmatprep.subr.bf16.mxu0 0
    %877 = vmatpush1.bf16.msra.mxu0 0
    %878 = vmatprep.subr.bf16.mxu0 0
    %879 = vmatpush1.bf16.msra.mxu0 0
    %880 = vmatprep.subr.bf16.mxu0 0
    %881 = vmatpush1.bf16.msra.mxu0 0
    %882 = vmatprep.subr.bf16.mxu0 0
    %883 = vmatpush1.bf16.msra.mxu0 0
    %884 = vmatprep.subr.bf16.mxu0 0
    %885 = vmatpush1.bf16.msra.mxu0 0
    %886 = vmatprep.subr.bf16.mxu0 0
    %887 = vmatpush1.bf16.msra.mxu0 0
    %888 = vmatprep.subr.bf16.mxu0 0
    %889 = vmatpush1.bf16.msra.mxu0 %v869
    %890 = vmatprep.subr.bf16.mxu0 0
    %891 = vmatpush2.bf16.msra.mxu0 0
    %892 = vmatprep.subr.bf16.mxu0 0
    %893 = vmatpush2.bf16.msra.mxu0 0
    %894 = vmatprep.subr.bf16.mxu0 0
    %895 = vmatpush2.bf16.msra.mxu0 0
    %896 = vmatprep.subr.bf16.mxu0 0
    %897 = vmatpush2.bf16.msra.mxu0 0
    %898 = vmatprep.subr.bf16.mxu0 0
    %899 = vmatpush2.bf16.msra.mxu0 0
    %900 = vmatprep.subr.bf16.mxu0 0
    %901 = vmatpush2.bf16.msra.mxu0 0
    %902 = vmatprep.subr.bf16.mxu0 0
    %903 = vmatpush2.bf16.msra.mxu0 0
    %904 = vmatprep.subr.bf16.mxu0 0
    %905 = vmatpush2.bf16.msra.mxu0 0
    %906 = vmatprep.mubr.bf16.mxu0 0
    %907 = vmatmul.mubr.bf16.gmra.mxu0 %v872
    %v908 = vpop.f32.mrf.mxu0
    %v909 = vadd.f32 0.0, %v908
    %v910 = vpop.f32.mrf.mxu0
    %v911 = vpop.f32.mrf.mxu0
    %v912 = vpop.f32.mrf.mxu0
    %913 = vdwg.mxu0
    %v915 = vlaneseq
    %v916 = vshrl.u32 %v915, 7
    %v917 = vsub.s32 0, %v916
    %v918 = vrot.slane %v854, %v917
    %v920 = vadd.f32 %v918, %v909
    %v921 = vpack.c.bf16 %v846, %v846
    %s922 = scalar_lea.vmem %s9, 8
    %v923 = vld [vmem:[%s922] sm:$0xf]
    %v924 = vld [vmem:[%s922 + $0x4] sm:$0xf]
    %v927 = vunpack.c.l.b16 %v923
    %v928 = vunpack.c.l.b16 %v924
    %v929 = vpack.c.b16 %v928, %v927
    %v932 = vsel %vm817, %v921, 0
    %934 = vmatprep.subr.bf16.mxu0 0
    %935 = vmatpush1.bf16.msra.mxu0 0
    %936 = vmatprep.subr.bf16.mxu0 0
    %937 = vmatpush1.bf16.msra.mxu0 0
    %938 = vmatprep.subr.bf16.mxu0 0
    %939 = vmatpush1.bf16.msra.mxu0 0
    %940 = vmatprep.subr.bf16.mxu0 0
    %941 = vmatpush1.bf16.msra.mxu0 0
    %942 = vmatprep.subr.bf16.mxu0 0
    %943 = vmatpush1.bf16.msra.mxu0 0
    %944 = vmatprep.subr.bf16.mxu0 0
    %945 = vmatpush1.bf16.msra.mxu0 0
    %946 = vmatprep.subr.bf16.mxu0 0
    %947 = vmatpush1.bf16.msra.mxu0 0
    %948 = vmatprep.subr.bf16.mxu0 0
    %949 = vmatpush1.bf16.msra.mxu0 %v929
    %950 = vmatprep.subr.bf16.mxu0 0
    %951 = vmatpush2.bf16.msra.mxu0 0
    %952 = vmatprep.subr.bf16.mxu0 0
    %953 = vmatpush2.bf16.msra.mxu0 0
    %954 = vmatprep.subr.bf16.mxu0 0
    %955 = vmatpush2.bf16.msra.mxu0 0
    %956 = vmatprep.subr.bf16.mxu0 0
    %957 = vmatpush2.bf16.msra.mxu0 0
    %958 = vmatprep.subr.bf16.mxu0 0
    %959 = vmatpush2.bf16.msra.mxu0 0
    %960 = vmatprep.subr.bf16.mxu0 0
    %961 = vmatpush2.bf16.msra.mxu0 0
    %962 = vmatprep.subr.bf16.mxu0 0
    %963 = vmatpush2.bf16.msra.mxu0 0
    %964 = vmatprep.subr.bf16.mxu0 0
    %965 = vmatpush2.bf16.msra.mxu0 0
    %966 = vmatprep.mubr.bf16.mxu0 0
    %967 = vmatmul.mubr.bf16.gmra.mxu0 %v932
    %v968 = vpop.f32.mrf.mxu0
    %v969 = vadd.f32 0.0, %v968
    %v970 = vpop.f32.mrf.mxu0
    %v971 = vpop.f32.mrf.mxu0
    %v972 = vpop.f32.mrf.mxu0
    %973 = vdwg.mxu0
    %v974 = vadd.f32 %v920, %v969
    %v975 = vpack.c.bf16 %v849, %v849
    %s976 = scalar_lea.vmem %s9, 16
    %v977 = vld [vmem:[%s976] sm:$0xf]
    %v978 = vld [vmem:[%s976 + $0x4] sm:$0xf]
    %v981 = vunpack.c.l.b16 %v977
    %v982 = vunpack.c.l.b16 %v978
    %v983 = vpack.c.b16 %v982, %v981
    %v986 = vsel %vm817, %v975, 0
    %988 = vmatprep.subr.bf16.mxu0 0
    %989 = vmatpush1.bf16.msra.mxu0 0
    %990 = vmatprep.subr.bf16.mxu0 0
    %991 = vmatpush1.bf16.msra.mxu0 0
    %992 = vmatprep.subr.bf16.mxu0 0
    %993 = vmatpush1.bf16.msra.mxu0 0
    %994 = vmatprep.subr.bf16.mxu0 0
    %995 = vmatpush1.bf16.msra.mxu0 0
    %996 = vmatprep.subr.bf16.mxu0 0
    %997 = vmatpush1.bf16.msra.mxu0 0
    %998 = vmatprep.subr.bf16.mxu0 0
    %999 = vmatpush1.bf16.msra.mxu0 0
    %1000 = vmatprep.subr.bf16.mxu0 0
    %1001 = vmatpush1.bf16.msra.mxu0 0
    %1002 = vmatprep.subr.bf16.mxu0 0
    %1003 = vmatpush1.bf16.msra.mxu0 %v983
    %1004 = vmatprep.subr.bf16.mxu0 0
    %1005 = vmatpush2.bf16.msra.mxu0 0
    %1006 = vmatprep.subr.bf16.mxu0 0
    %1007 = vmatpush2.bf16.msra.mxu0 0
    %1008 = vmatprep.subr.bf16.mxu0 0
    %1009 = vmatpush2.bf16.msra.mxu0 0
    %1010 = vmatprep.subr.bf16.mxu0 0
    %1011 = vmatpush2.bf16.msra.mxu0 0
    %1012 = vmatprep.subr.bf16.mxu0 0
    %1013 = vmatpush2.bf16.msra.mxu0 0
    %1014 = vmatprep.subr.bf16.mxu0 0
    %1015 = vmatpush2.bf16.msra.mxu0 0
    %1016 = vmatprep.subr.bf16.mxu0 0
    %1017 = vmatpush2.bf16.msra.mxu0 0
    %1018 = vmatprep.subr.bf16.mxu0 0
    %1019 = vmatpush2.bf16.msra.mxu0 0
    %1020 = vmatprep.mubr.bf16.mxu0 0
    %1021 = vmatmul.mubr.bf16.gmra.mxu0 %v986
    %v1022 = vpop.f32.mrf.mxu0
    %v1023 = vadd.f32 0.0, %v1022
    %v1024 = vpop.f32.mrf.mxu0
    %v1025 = vpop.f32.mrf.mxu0
    %v1026 = vpop.f32.mrf.mxu0
    %1027 = vdwg.mxu0
    %v1028 = vadd.f32 %v974, %v1023
    %v1029 = vpack.c.bf16 %v851, %v851
    %s1030 = scalar_lea.vmem %s9, 24
    %v1031 = vld [vmem:[%s1030] sm:$0xf]
    %v1032 = vld [vmem:[%s1030 + $0x4] sm:$0xf]
    %v1035 = vunpack.c.l.b16 %v1031
    %v1036 = vunpack.c.l.b16 %v1032
    %v1037 = vpack.c.b16 %v1036, %v1035
    %v1040 = vsel %vm817, %v1029, 0
    %1042 = vmatprep.subr.bf16.mxu0 0
    %1043 = vmatpush1.bf16.msra.mxu0 0
    %1044 = vmatprep.subr.bf16.mxu0 0
    %1045 = vmatpush1.bf16.msra.mxu0 0
    %1046 = vmatprep.subr.bf16.mxu0 0
    %1047 = vmatpush1.bf16.msra.mxu0 0
    %1048 = vmatprep.subr.bf16.mxu0 0
    %1049 = vmatpush1.bf16.msra.mxu0 0
    %1050 = vmatprep.subr.bf16.mxu0 0
    %1051 = vmatpush1.bf16.msra.mxu0 0
    %1052 = vmatprep.subr.bf16.mxu0 0
    %1053 = vmatpush1.bf16.msra.mxu0 0
    %1054 = vmatprep.subr.bf16.mxu0 0
    %1055 = vmatpush1.bf16.msra.mxu0 0
    %1056 = vmatprep.subr.bf16.mxu0 0
    %1057 = vmatpush1.bf16.msra.mxu0 %v1037
    %1058 = vmatprep.subr.bf16.mxu0 0
    %1059 = vmatpush2.bf16.msra.mxu0 0
    %1060 = vmatprep.subr.bf16.mxu0 0
    %1061 = vmatpush2.bf16.msra.mxu0 0
    %1062 = vmatprep.subr.bf16.mxu0 0
    %1063 = vmatpush2.bf16.msra.mxu0 0
    %1064 = vmatprep.subr.bf16.mxu0 0
    %1065 = vmatpush2.bf16.msra.mxu0 0
    %1066 = vmatprep.subr.bf16.mxu0 0
    %1067 = vmatpush2.bf16.msra.mxu0 0
    %1068 = vmatprep.subr.bf16.mxu0 0
    %1069 = vmatpush2.bf16.msra.mxu0 0
    %1070 = vmatprep.subr.bf16.mxu0 0
    %1071 = vmatpush2.bf16.msra.mxu0 0
    %1072 = vmatprep.subr.bf16.mxu0 0
    %1073 = vmatpush2.bf16.msra.mxu0 0
    %1074 = vmatprep.mubr.bf16.mxu0 0
    %1075 = vmatmul.mubr.bf16.gmra.mxu0 %v1040
    %v1076 = vpop.f32.mrf.mxu0
    %v1077 = vadd.f32 0.0, %v1076
    %v1078 = vpop.f32.mrf.mxu0
    %v1079 = vpop.f32.mrf.mxu0
    %v1080 = vpop.f32.mrf.mxu0
    %1081 = vdwg.mxu0
    %v1082 = vadd.f32 %v1028, %v1077
    %v1083 = vpack.c.bf16 %v853, %v853
    %s1084 = scalar_lea.vmem %s9, 32
    %v1085 = vld [vmem:[%s1084] sm:$0xf]
    %v1086 = vld [vmem:[%s1084 + $0x4] sm:$0xf]
    %v1089 = vunpack.c.l.b16 %v1085
    %v1090 = vunpack.c.l.b16 %v1086
    %v1091 = vpack.c.b16 %v1090, %v1089
    %v1094 = vsel %vm817, %v1083, 0
    %1096 = vmatprep.subr.bf16.mxu0 0
    %1097 = vmatpush1.bf16.msra.mxu0 0
    %1098 = vmatprep.subr.bf16.mxu0 0
    %1099 = vmatpush1.bf16.msra.mxu0 0
    %1100 = vmatprep.subr.bf16.mxu0 0
    %1101 = vmatpush1.bf16.msra.mxu0 0
    %1102 = vmatprep.subr.bf16.mxu0 0
    %1103 = vmatpush1.bf16.msra.mxu0 0
    %1104 = vmatprep.subr.bf16.mxu0 0
    %1105 = vmatpush1.bf16.msra.mxu0 0
    %1106 = vmatprep.subr.bf16.mxu0 0
    %1107 = vmatpush1.bf16.msra.mxu0 0
    %1108 = vmatprep.subr.bf16.mxu0 0
    %1109 = vmatpush1.bf16.msra.mxu0 0
    %1110 = vmatprep.subr.bf16.mxu0 0
    %1111 = vmatpush1.bf16.msra.mxu0 %v1091
    %1112 = vmatprep.subr.bf16.mxu0 0
    %1113 = vmatpush2.bf16.msra.mxu0 0
    %1114 = vmatprep.subr.bf16.mxu0 0
    %1115 = vmatpush2.bf16.msra.mxu0 0
    %1116 = vmatprep.subr.bf16.mxu0 0
    %1117 = vmatpush2.bf16.msra.mxu0 0
    %1118 = vmatprep.subr.bf16.mxu0 0
    %1119 = vmatpush2.bf16.msra.mxu0 0
    %1120 = vmatprep.subr.bf16.mxu0 0
    %1121 = vmatpush2.bf16.msra.mxu0 0
    %1122 = vmatprep.subr.bf16.mxu0 0
    %1123 = vmatpush2.bf16.msra.mxu0 0
    %1124 = vmatprep.subr.bf16.mxu0 0
    %1125 = vmatpush2.bf16.msra.mxu0 0
    %1126 = vmatprep.subr.bf16.mxu0 0
    %1127 = vmatpush2.bf16.msra.mxu0 0
    %1128 = vmatprep.mubr.bf16.mxu0 0
    %1129 = vmatmul.mubr.bf16.gmra.mxu0 %v1094
    %v1130 = vpop.f32.mrf.mxu0
    %v1131 = vadd.f32 0.0, %v1130
    %v1132 = vpop.f32.mrf.mxu0
    %v1133 = vpop.f32.mrf.mxu0
    %v1134 = vpop.f32.mrf.mxu0
    %1135 = vdwg.mxu0
    %v1136 = vadd.f32 %v1082, %v1131
    %1137 = vst [vmem:[#allocation2] sm:$0xff] %v1136
    // Predicated region
    $region46: #{tpu_custom_call.1} parent=1 // pred_check
      _
    $region47: #{tpu_custom_call.1} parent=1 // pred_check_branch
      %1139 = sbr.rel (0) target = $region49
    $region48: #{tpu_custom_call.1} parent=1 // pred_region
      %s1141 = ssub.s32 128, 128
      %1142 = vsyncadd [#allocation3], %s1141
      %s1144 = sshll.u32 [#allocation2], 4
      %s1145 = int_to_ptr.vmem [resolvable:$true] %s1144
      %1147 = dma.vmem_to_hbm [thread:$0]  %s1145, 128, %s11, [#allocation3]
    $region49: #{tpu_custom_call.1} parent=1 // pred_fallthru
      _
    // Predicated region
    $region50: #{tpu_custom_call.1} parent=1 // pred_check
      _
    $region51: #{tpu_custom_call.1} parent=1 // pred_check_branch
      %1149 = sbr.rel (0) target = $region53
    $region52: #{tpu_custom_call.1} parent=1 // pred_region
      %1150 = dma.done [#allocation3], 128
    $region53: #{tpu_custom_call.1} parent=1 // pred_fallthru
      _
    %1151 = vsyncpa [#allocation3], 1

</llo_original>
